<compile_context>
chip_gen: v7x
topology: tpu7x:2x2x1
jax: 0.10.0
libtpu: 0.0.40
codegen_flags: <defaults>
</compile_context>

<pallas_src>
import math

import jax
import jax.numpy as jnp
from jax import lax
from jax.experimental import pallas as pl
from jax.experimental.pallas import tpu as pltpu


def bert_encoder_kernel(x_ref, mask_ref,
                        wqkv_ref, bqkv_ref,
                        wff_ref, bff_ref, gamma_ref, beta_ref,
                        out_ref,
                        h_ref, qkv_heads_ref, ctx_heads_ref, attn_ref):
    """One grid step = (batch element b, layer l)."""
    l = pl.program_id(1)
    num_layers = pl.num_programs(1)
    S, D = h_ref.shape
    _, H, _, hs = qkv_heads_ref.shape
    dt = qkv_heads_ref.dtype                          # compute dtype (bf16)

    # Load the input hidden state into the resident f32 scratch at layer 0.
    @pl.when(l == 0)
    def _():
        h_ref[...] = x_ref[0].astype(jnp.float32)

    x32 = h_ref[...]                                  # (S, D) f32 resident
    x = x32.astype(dt)                                # matmul operand

    # Attention-mask bias kept as a (1, S) row; broadcast happens in the add.
    bias_row = (1.0 - mask_ref[0].astype(jnp.float32)) * (-10000.0)   # (1, S)

    # Fused QKV projection: one full-width (S, D) @ (D, 3D) MXU pass.
    # (1/sqrt(dim_model) and the Q bias scale are folded into the Q columns.)
    qkv = (jnp.dot(x, wqkv_ref[0], preferred_element_type=jnp.float32)
           + bqkv_ref[0])                             # (S, 3D) f32

    # Scatter into a head-major scratch so the head loop only needs
    # leading-dim (dynamic-index-safe) reads.  Static lane slices, cheap vst
    # work that overlaps the MXU.
    for i in range(3):                                # 0=Q, 1=K, 2=V
        for h in range(H):
            j = i * H + h
            qkv_heads_ref[i, h] = qkv[:, j * hs:(j + 1) * hs].astype(dt)

    nt = (((1,), (1,)), ((), ()))                     # A @ B.T contraction

    def head_body(h, carry):
        q = qkv_heads_ref[0, h]                       # (S, hs) dt
        k = qkv_heads_ref[1, h]                       # (S, hs) dt
        v = qkv_heads_ref[2, h]                       # (S, hs) dt
        # scores = q @ k^T (transposed-RHS dot_general: no materialized
        # transpose; MXU handles the contraction-dim layout).
        s = lax.dot_general(q, k, nt,
                            preferred_element_type=jnp.float32)   # (S, S) f32
        s = s + bias_row                              # broadcast (1,S) row
        s = s - jnp.max(s, axis=-1, keepdims=True)
        p = jnp.exp(s)
        p = p * pl.reciprocal(jnp.sum(p, axis=-1, keepdims=True), approx=True)
        # attention dropout: identity in eval mode
        ctx = jnp.dot(p.astype(dt), v,
                      preferred_element_type=jnp.float32)         # (S, hs)
        ctx_heads_ref[h] = ctx.astype(dt)
        return carry

    lax.fori_loop(0, H, head_body, 0)

    # Merge heads into a lane-dense (S, D) slab (static lane-slice stores),
    # then one full-depth (S, D) @ (D, D) feed-forward matmul.
    for h in range(H):
        attn_ref[:, h * hs:(h + 1) * hs] = ctx_heads_ref[h]
    y = (jnp.dot(attn_ref[...], wff_ref[0], preferred_element_type=jnp.float32)
         + bff_ref[0])                                # (S, D) f32

    # GELU (tanh approximation, as in the reference), f32.
    c = math.sqrt(2.0 / math.pi)
    y = 0.5 * y * (1.0 + jnp.tanh(c * (y + 0.044715 * (y * y * y))))
    # dropout(p=0.2): identity in eval mode

    # Residual + LayerNorm(dim_model, eps=1e-10), statistics in f32.
    z = x32 + y
    mean = jnp.mean(z, axis=-1, keepdims=True)
    zc = z - mean
    var = jnp.mean(zc * zc, axis=-1, keepdims=True)
    out = zc * lax.rsqrt(var + 1e-10) * gamma_ref[0] + beta_ref[0]

    # Keep the hidden state resident (f32) for the next layer.
    h_ref[...] = out

    # Only the last layer writes the HBM output block (flushed once per batch).
    @pl.when(l == num_layers - 1)
    def _():
        out_ref[0] = out.astype(out_ref.dtype)


def bert_encoder(hidden_states, attention_mask, layer_params, *, num_heads,
                 compute_dtype=jnp.bfloat16):
    """Full BertEncoder forward in a single pallas_call (grid = (B, L))."""
    B, S, D = hidden_states.shape
    H = num_heads
    assert D % H == 0
    hs = D // H
    L = len(layer_params)
    scale = 1.0 / math.sqrt(float(D))   # reference quirk: 1/sqrt(dim_model)

    # Fused QKV slab (Q columns pre-scaled) + fused bias; unsplit Wff.
    wqkv = jnp.stack([jnp.concatenate([p["wq"] * scale, p["wk"], p["wv"]], axis=1)
                      for p in layer_params]).astype(compute_dtype)            # (L, D, 3D)
    bqkv = jnp.stack([jnp.concatenate([p["bq"] * scale, p["bk"], p["bv"]], axis=-1)
                      for p in layer_params]).astype(jnp.float32)              # (L, 1, 3D)
    wff = jnp.stack([p["wff"] for p in layer_params]).astype(compute_dtype)    # (L, D, D)
    bff = jnp.stack([p["bff"] for p in layer_params]).astype(jnp.float32)      # (L, 1, D)
    gamma = jnp.stack([p["gamma"] for p in layer_params]).astype(jnp.float32)  # (L, 1, D)
    beta = jnp.stack([p["beta"] for p in layer_params]).astype(jnp.float32)    # (L, 1, D)

    x = hidden_states.astype(compute_dtype)
    mask = attention_mask.astype(jnp.float32)

    layer_map3 = lambda b, l: (l, 0, 0)
    batch_map = lambda b, l: (b, 0, 0)

    out = pl.pallas_call(
        bert_encoder_kernel,
        out_shape=jax.ShapeDtypeStruct((B, S, D), jnp.float32),
        grid_spec=pltpu.PrefetchScalarGridSpec(
            num_scalar_prefetch=0,
            grid=(B, L),
            in_specs=[
                pl.BlockSpec((1, S, D), batch_map),          # hidden_states
                pl.BlockSpec((1, 1, S), batch_map),          # attention_mask
                pl.BlockSpec((1, D, 3 * D), layer_map3),     # W_qkv (Q scaled)
                pl.BlockSpec((1, 1, 3 * D), layer_map3),     # b_qkv (Q scaled)
                pl.BlockSpec((1, D, D), layer_map3),         # W_ff
                pl.BlockSpec((1, 1, D), layer_map3),         # b_ff
                pl.BlockSpec((1, 1, D), layer_map3),         # ln gamma
                pl.BlockSpec((1, 1, D), layer_map3),         # ln beta
            ],
            out_specs=pl.BlockSpec((1, S, D), batch_map),
            scratch_shapes=[
                pltpu.VMEM((S, D), jnp.float32),             # resident hidden (f32)
                pltpu.VMEM((3, H, S, hs), compute_dtype),    # head-split Q/K/V
                pltpu.VMEM((H, S, hs), compute_dtype),       # per-head context
                pltpu.VMEM((S, D), compute_dtype),           # merged attention value
            ],
        ),
        compiler_params=pltpu.CompilerParams(
            dimension_semantics=("parallel", "arbitrary"),
            vmem_limit_bytes=56 * 1024 * 1024),
    )(x, mask, wqkv, bqkv, wff, bff, gamma, beta)

    return out.astype(hidden_states.dtype)


def init_layer_params(key, dim_model):
    """Deterministic nn.Linear-style init. Weights stored as (in, out)."""
    ks = jax.random.split(key, 8)
    bound = 1.0 / math.sqrt(dim_model)
    u = lambda k, shape: jax.random.uniform(k, shape, jnp.float32, -bound, bound)
    return {
        "wq": u(ks[0], (dim_model, dim_model)), "bq": u(ks[1], (1, dim_model)),
        "wk": u(ks[2], (dim_model, dim_model)), "bk": u(ks[3], (1, dim_model)),
        "wv": u(ks[4], (dim_model, dim_model)), "bv": u(ks[5], (1, dim_model)),
        "wff": u(ks[6], (dim_model, dim_model)), "bff": u(ks[7], (1, dim_model)),
        "gamma": jnp.ones((1, dim_model), jnp.float32),
        "beta": jnp.zeros((1, dim_model), jnp.float32),
    }


if __name__ == "__main__":
    # Small shapes consistent with the module.
    B, S, D = 2, 8, 32
    NUM_HEADS = 4
    NUM_LAYERS = 2

    key = jax.random.PRNGKey(0)
    k_x, k_m, k_p = jax.random.split(key, 3)

    hidden_states = jax.random.normal(k_x, (B, S, D), jnp.float32)
    # attention_mask: 1.0 = attend, 0.0 = masked; layout [B, 1, S]
    attention_mask = (jax.random.uniform(k_m, (B, 1, S)) > 0.2).astype(jnp.float32)

    layer_keys = jax.random.split(k_p, NUM_LAYERS)
    layer_params = [init_layer_params(lk, D) for lk in layer_keys]

    out = bert_encoder(hidden_states, attention_mask, layer_params,
                       num_heads=NUM_HEADS)
    jax.block_until_ready(out)
    assert out.shape == (B, S, D)
    print("KERNEL_OK")
</pallas_src>

<mosaic_0001>
module attributes {stable_mosaic.version = 11 : i64} {
  func.func @bert_encoder_kernel(%arg0: i32, %arg1: i32, %arg2: memref<1x8x32xbf16, #tpu.memory_space<vmem>>, %arg3: memref<1x1x8xf32, #tpu.memory_space<vmem>>, %arg4: memref<1x32x96xbf16, #tpu.memory_space<vmem>>, %arg5: memref<1x1x96xf32, #tpu.memory_space<vmem>>, %arg6: memref<1x32x32xbf16, #tpu.memory_space<vmem>>, %arg7: memref<1x1x32xf32, #tpu.memory_space<vmem>>, %arg8: memref<1x1x32xf32, #tpu.memory_space<vmem>>, %arg9: memref<1x1x32xf32, #tpu.memory_space<vmem>>, %arg10: memref<1x8x32xf32, #tpu.memory_space<vmem>>, %arg11: memref<8x32xf32, #tpu.memory_space<vmem>>, %arg12: memref<3x4x8x8xbf16, #tpu.memory_space<vmem>>, %arg13: memref<4x8x8xbf16, #tpu.memory_space<vmem>>, %arg14: memref<8x32xbf16, #tpu.memory_space<vmem>>) attributes {dimension_semantics = [#tpu.dimension_semantics<parallel>, #tpu.dimension_semantics<arbitrary>], iteration_bounds = array<i64: 2, 2>, scalar_prefetch = 0 : i64, scratch_operands = 4 : i64, tpu.core_type = #tpu.core_type<tc>, window_params = [{transform_indices = @transform_0, window_bounds = array<i64: 1, 8, 32>}, {transform_indices = @transform_1, window_bounds = array<i64: 1, 1, 8>}, {transform_indices = @transform_2, window_bounds = array<i64: 1, 32, 96>}, {transform_indices = @transform_3, window_bounds = array<i64: 1, 1, 96>}, {transform_indices = @transform_4, window_bounds = array<i64: 1, 32, 32>}, {transform_indices = @transform_5, window_bounds = array<i64: 1, 1, 32>}, {transform_indices = @transform_6, window_bounds = array<i64: 1, 1, 32>}, {transform_indices = @transform_7, window_bounds = array<i64: 1, 1, 32>}, {transform_indices = @transform_8, window_bounds = array<i64: 1, 8, 32>}]} {
    %c0_i32 = arith.constant 0 : i32
    %0 = arith.cmpi eq, %arg1, %c0_i32 : i32
    %1 = arith.extui %0 : i1 to i32
    %c0_i32_0 = arith.constant 0 : i32
    %2 = arith.cmpi ne, %1, %c0_i32_0 : i32
    scf.if %2 {
      %c0_105 = arith.constant 0 : index
      %c0_106 = arith.constant 0 : index
      %c0_107 = arith.constant 0 : index
      %141 = vector.load %arg2[%c0_105, %c0_106, %c0_107] : memref<1x8x32xbf16, #tpu.memory_space<vmem>>, vector<1x8x32xbf16>
      %142 = vector.shape_cast %141 : vector<1x8x32xbf16> to vector<8x32xbf16>
      %143 = arith.extf %142 : vector<8x32xbf16> to vector<8x32xf32>
      %c0_108 = arith.constant 0 : index
      %c0_109 = arith.constant 0 : index
      %144 = vector.load %arg11[%c0_108, %c0_109] : memref<8x32xf32, #tpu.memory_space<vmem>>, vector<8x32xf32>
      tpu.vector_store %arg11[%c0_108, %c0_109], %143 {strides = array<i32>} : memref<8x32xf32, #tpu.memory_space<vmem>>, vector<8x32xf32>,
    } else {
    }
    %c0 = arith.constant 0 : index
    %c0_1 = arith.constant 0 : index
    %3 = vector.load %arg11[%c0, %c0_1] : memref<8x32xf32, #tpu.memory_space<vmem>>, vector<8x32xf32>
    %4 = arith.truncf %3 : vector<8x32xf32> to vector<8x32xbf16>
    %c0_2 = arith.constant 0 : index
    %c0_3 = arith.constant 0 : index
    %c0_4 = arith.constant 0 : index
    %5 = vector.load %arg3[%c0_2, %c0_3, %c0_4] : memref<1x1x8xf32, #tpu.memory_space<vmem>>, vector<1x1x8xf32>
    %6 = vector.shape_cast %5 : vector<1x1x8xf32> to vector<1x8xf32>
    %cst = arith.constant 1.000000e+00 : f32
    %7 = vector.broadcast %cst : f32 to vector<1x8xf32>
    %8 = arith.subf %7, %6 : vector<1x8xf32>
    %cst_5 = arith.constant -1.000000e+04 : f32
    %9 = vector.broadcast %cst_5 : f32 to vector<1x8xf32>
    %10 = arith.mulf %8, %9 : vector<1x8xf32>
    %c0_6 = arith.constant 0 : index
    %c0_7 = arith.constant 0 : index
    %c0_8 = arith.constant 0 : index
    %11 = vector.load %arg4[%c0_6, %c0_7, %c0_8] : memref<1x32x96xbf16, #tpu.memory_space<vmem>>, vector<1x32x96xbf16>
    %12 = vector.shape_cast %11 : vector<1x32x96xbf16> to vector<32x96xbf16>
    %cst_9 = arith.constant dense<0.000000e+00> : vector<8x96xf32>
    %13 = tpu.matmul %4, %12, %cst_9 {dimension_numbers = #tpu.dot_dimension_numbers<[1], [0], [0], [1], [0, 0, 1, 1], [], []>} : vector<8x32xbf16>, vector<32x96xbf16>, vector<8x96xf32> -> vector<8x96xf32>
    %c0_10 = arith.constant 0 : index
    %c0_11 = arith.constant 0 : index
    %c0_12 = arith.constant 0 : index
    %14 = vector.load %arg5[%c0_10, %c0_11, %c0_12] : memref<1x1x96xf32, #tpu.memory_space<vmem>>, vector<1x1x96xf32>
    %15 = vector.shape_cast %14 : vector<1x1x96xf32> to vector<1x96xf32>
    %16 = vector.broadcast %15 : vector<1x96xf32> to vector<8x96xf32>
    %17 = arith.addf %13, %16 : vector<8x96xf32>
    %18 = vector.extract_strided_slice %17 {offsets = [0, 0], sizes = [8, 8], strides = [1, 1]} : vector<8x96xf32> to vector<8x8xf32>
    %19 = arith.truncf %18 : vector<8x8xf32> to vector<8x8xbf16>
    %c0_13 = arith.constant 0 : index
    %c0_14 = arith.constant 0 : index
    %c0_15 = arith.constant 0 : index
    %c0_16 = arith.constant 0 : index
    %20 = vector.load %arg12[%c0_13, %c0_14, %c0_15, %c0_16] : memref<3x4x8x8xbf16, #tpu.memory_space<vmem>>, vector<1x1x8x8xbf16>
    %21 = vector.shape_cast %20 : vector<1x1x8x8xbf16> to vector<8x8xbf16>
    %22 = vector.shape_cast %19 : vector<8x8xbf16> to vector<1x1x8x8xbf16>
    tpu.vector_store %arg12[%c0_13, %c0_14, %c0_15, %c0_16], %22 {strides = array<i32>} : memref<3x4x8x8xbf16, #tpu.memory_space<vmem>>, vector<1x1x8x8xbf16>,
    %23 = vector.extract_strided_slice %17 {offsets = [0, 8], sizes = [8, 8], strides = [1, 1]} : vector<8x96xf32> to vector<8x8xf32>
    %24 = arith.truncf %23 : vector<8x8xf32> to vector<8x8xbf16>
    %c0_17 = arith.constant 0 : index
    %c1 = arith.constant 1 : index
    %c0_18 = arith.constant 0 : index
    %c0_19 = arith.constant 0 : index
    %25 = vector.load %arg12[%c0_17, %c1, %c0_18, %c0_19] : memref<3x4x8x8xbf16, #tpu.memory_space<vmem>>, vector<1x1x8x8xbf16>
    %26 = vector.shape_cast %25 : vector<1x1x8x8xbf16> to vector<8x8xbf16>
    %27 = vector.shape_cast %24 : vector<8x8xbf16> to vector<1x1x8x8xbf16>
    tpu.vector_store %arg12[%c0_17, %c1, %c0_18, %c0_19], %27 {strides = array<i32>} : memref<3x4x8x8xbf16, #tpu.memory_space<vmem>>, vector<1x1x8x8xbf16>,
    %28 = vector.extract_strided_slice %17 {offsets = [0, 16], sizes = [8, 8], strides = [1, 1]} : vector<8x96xf32> to vector<8x8xf32>
    %29 = arith.truncf %28 : vector<8x8xf32> to vector<8x8xbf16>
    %c0_20 = arith.constant 0 : index
    %c2 = arith.constant 2 : index
    %c0_21 = arith.constant 0 : index
    %c0_22 = arith.constant 0 : index
    %30 = vector.load %arg12[%c0_20, %c2, %c0_21, %c0_22] : memref<3x4x8x8xbf16, #tpu.memory_space<vmem>>, vector<1x1x8x8xbf16>
    %31 = vector.shape_cast %30 : vector<1x1x8x8xbf16> to vector<8x8xbf16>
    %32 = vector.shape_cast %29 : vector<8x8xbf16> to vector<1x1x8x8xbf16>
    tpu.vector_store %arg12[%c0_20, %c2, %c0_21, %c0_22], %32 {strides = array<i32>} : memref<3x4x8x8xbf16, #tpu.memory_space<vmem>>, vector<1x1x8x8xbf16>,
    %33 = vector.extract_strided_slice %17 {offsets = [0, 24], sizes = [8, 8], strides = [1, 1]} : vector<8x96xf32> to vector<8x8xf32>
    %34 = arith.truncf %33 : vector<8x8xf32> to vector<8x8xbf16>
    %c0_23 = arith.constant 0 : index
    %c3 = arith.constant 3 : index
    %c0_24 = arith.constant 0 : index
    %c0_25 = arith.constant 0 : index
    %35 = vector.load %arg12[%c0_23, %c3, %c0_24, %c0_25] : memref<3x4x8x8xbf16, #tpu.memory_space<vmem>>, vector<1x1x8x8xbf16>
    %36 = vector.shape_cast %35 : vector<1x1x8x8xbf16> to vector<8x8xbf16>
    %37 = vector.shape_cast %34 : vector<8x8xbf16> to vector<1x1x8x8xbf16>
    tpu.vector_store %arg12[%c0_23, %c3, %c0_24, %c0_25], %37 {strides = array<i32>} : memref<3x4x8x8xbf16, #tpu.memory_space<vmem>>, vector<1x1x8x8xbf16>,
    %38 = vector.extract_strided_slice %17 {offsets = [0, 32], sizes = [8, 8], strides = [1, 1]} : vector<8x96xf32> to vector<8x8xf32>
    %39 = arith.truncf %38 : vector<8x8xf32> to vector<8x8xbf16>
    %c1_26 = arith.constant 1 : index
    %c0_27 = arith.constant 0 : index
    %c0_28 = arith.constant 0 : index
    %c0_29 = arith.constant 0 : index
    %40 = vector.load %arg12[%c1_26, %c0_27, %c0_28, %c0_29] : memref<3x4x8x8xbf16, #tpu.memory_space<vmem>>, vector<1x1x8x8xbf16>
    %41 = vector.shape_cast %40 : vector<1x1x8x8xbf16> to vector<8x8xbf16>
    %42 = vector.shape_cast %39 : vector<8x8xbf16> to vector<1x1x8x8xbf16>
    tpu.vector_store %arg12[%c1_26, %c0_27, %c0_28, %c0_29], %42 {strides = array<i32>} : memref<3x4x8x8xbf16, #tpu.memory_space<vmem>>, vector<1x1x8x8xbf16>,
    %43 = vector.extract_strided_slice %17 {offsets = [0, 40], sizes = [8, 8], strides = [1, 1]} : vector<8x96xf32> to vector<8x8xf32>
    %44 = arith.truncf %43 : vector<8x8xf32> to vector<8x8xbf16>
    %c1_30 = arith.constant 1 : index
    %c1_31 = arith.constant 1 : index
    %c0_32 = arith.constant 0 : index
    %c0_33 = arith.constant 0 : index
    %45 = vector.load %arg12[%c1_30, %c1_31, %c0_32, %c0_33] : memref<3x4x8x8xbf16, #tpu.memory_space<vmem>>, vector<1x1x8x8xbf16>
    %46 = vector.shape_cast %45 : vector<1x1x8x8xbf16> to vector<8x8xbf16>
    %47 = vector.shape_cast %44 : vector<8x8xbf16> to vector<1x1x8x8xbf16>
    tpu.vector_store %arg12[%c1_30, %c1_31, %c0_32, %c0_33], %47 {strides = array<i32>} : memref<3x4x8x8xbf16, #tpu.memory_space<vmem>>, vector<1x1x8x8xbf16>,
    %48 = vector.extract_strided_slice %17 {offsets = [0, 48], sizes = [8, 8], strides = [1, 1]} : vector<8x96xf32> to vector<8x8xf32>
    %49 = arith.truncf %48 : vector<8x8xf32> to vector<8x8xbf16>
    %c1_34 = arith.constant 1 : index
    %c2_35 = arith.constant 2 : index
    %c0_36 = arith.constant 0 : index
    %c0_37 = arith.constant 0 : index
    %50 = vector.load %arg12[%c1_34, %c2_35, %c0_36, %c0_37] : memref<3x4x8x8xbf16, #tpu.memory_space<vmem>>, vector<1x1x8x8xbf16>
    %51 = vector.shape_cast %50 : vector<1x1x8x8xbf16> to vector<8x8xbf16>
    %52 = vector.shape_cast %49 : vector<8x8xbf16> to vector<1x1x8x8xbf16>
    tpu.vector_store %arg12[%c1_34, %c2_35, %c0_36, %c0_37], %52 {strides = array<i32>} : memref<3x4x8x8xbf16, #tpu.memory_space<vmem>>, vector<1x1x8x8xbf16>,
    %53 = vector.extract_strided_slice %17 {offsets = [0, 56], sizes = [8, 8], strides = [1, 1]} : vector<8x96xf32> to vector<8x8xf32>
    %54 = arith.truncf %53 : vector<8x8xf32> to vector<8x8xbf16>
    %c1_38 = arith.constant 1 : index
    %c3_39 = arith.constant 3 : index
    %c0_40 = arith.constant 0 : index
    %c0_41 = arith.constant 0 : index
    %55 = vector.load %arg12[%c1_38, %c3_39, %c0_40, %c0_41] : memref<3x4x8x8xbf16, #tpu.memory_space<vmem>>, vector<1x1x8x8xbf16>
    %56 = vector.shape_cast %55 : vector<1x1x8x8xbf16> to vector<8x8xbf16>
    %57 = vector.shape_cast %54 : vector<8x8xbf16> to vector<1x1x8x8xbf16>
    tpu.vector_store %arg12[%c1_38, %c3_39, %c0_40, %c0_41], %57 {strides = array<i32>} : memref<3x4x8x8xbf16, #tpu.memory_space<vmem>>, vector<1x1x8x8xbf16>,
    %58 = vector.extract_strided_slice %17 {offsets = [0, 64], sizes = [8, 8], strides = [1, 1]} : vector<8x96xf32> to vector<8x8xf32>
    %59 = arith.truncf %58 : vector<8x8xf32> to vector<8x8xbf16>
    %c2_42 = arith.constant 2 : index
    %c0_43 = arith.constant 0 : index
    %c0_44 = arith.constant 0 : index
    %c0_45 = arith.constant 0 : index
    %60 = vector.load %arg12[%c2_42, %c0_43, %c0_44, %c0_45] : memref<3x4x8x8xbf16, #tpu.memory_space<vmem>>, vector<1x1x8x8xbf16>
    %61 = vector.shape_cast %60 : vector<1x1x8x8xbf16> to vector<8x8xbf16>
    %62 = vector.shape_cast %59 : vector<8x8xbf16> to vector<1x1x8x8xbf16>
    tpu.vector_store %arg12[%c2_42, %c0_43, %c0_44, %c0_45], %62 {strides = array<i32>} : memref<3x4x8x8xbf16, #tpu.memory_space<vmem>>, vector<1x1x8x8xbf16>,
    %63 = vector.extract_strided_slice %17 {offsets = [0, 72], sizes = [8, 8], strides = [1, 1]} : vector<8x96xf32> to vector<8x8xf32>
    %64 = arith.truncf %63 : vector<8x8xf32> to vector<8x8xbf16>
    %c2_46 = arith.constant 2 : index
    %c1_47 = arith.constant 1 : index
    %c0_48 = arith.constant 0 : index
    %c0_49 = arith.constant 0 : index
    %65 = vector.load %arg12[%c2_46, %c1_47, %c0_48, %c0_49] : memref<3x4x8x8xbf16, #tpu.memory_space<vmem>>, vector<1x1x8x8xbf16>
    %66 = vector.shape_cast %65 : vector<1x1x8x8xbf16> to vector<8x8xbf16>
    %67 = vector.shape_cast %64 : vector<8x8xbf16> to vector<1x1x8x8xbf16>
    tpu.vector_store %arg12[%c2_46, %c1_47, %c0_48, %c0_49], %67 {strides = array<i32>} : memref<3x4x8x8xbf16, #tpu.memory_space<vmem>>, vector<1x1x8x8xbf16>,
    %68 = vector.extract_strided_slice %17 {offsets = [0, 80], sizes = [8, 8], strides = [1, 1]} : vector<8x96xf32> to vector<8x8xf32>
    %69 = arith.truncf %68 : vector<8x8xf32> to vector<8x8xbf16>
    %c2_50 = arith.constant 2 : index
    %c2_51 = arith.constant 2 : index
    %c0_52 = arith.constant 0 : index
    %c0_53 = arith.constant 0 : index
    %70 = vector.load %arg12[%c2_50, %c2_51, %c0_52, %c0_53] : memref<3x4x8x8xbf16, #tpu.memory_space<vmem>>, vector<1x1x8x8xbf16>
    %71 = vector.shape_cast %70 : vector<1x1x8x8xbf16> to vector<8x8xbf16>
    %72 = vector.shape_cast %69 : vector<8x8xbf16> to vector<1x1x8x8xbf16>
    tpu.vector_store %arg12[%c2_50, %c2_51, %c0_52, %c0_53], %72 {strides = array<i32>} : memref<3x4x8x8xbf16, #tpu.memory_space<vmem>>, vector<1x1x8x8xbf16>,
    %73 = vector.extract_strided_slice %17 {offsets = [0, 88], sizes = [8, 8], strides = [1, 1]} : vector<8x96xf32> to vector<8x8xf32>
    %74 = arith.truncf %73 : vector<8x8xf32> to vector<8x8xbf16>
    %c2_54 = arith.constant 2 : index
    %c3_55 = arith.constant 3 : index
    %c0_56 = arith.constant 0 : index
    %c0_57 = arith.constant 0 : index
    %75 = vector.load %arg12[%c2_54, %c3_55, %c0_56, %c0_57] : memref<3x4x8x8xbf16, #tpu.memory_space<vmem>>, vector<1x1x8x8xbf16>
    %76 = vector.shape_cast %75 : vector<1x1x8x8xbf16> to vector<8x8xbf16>
    %77 = vector.shape_cast %74 : vector<8x8xbf16> to vector<1x1x8x8xbf16>
    tpu.vector_store %arg12[%c2_54, %c3_55, %c0_56, %c0_57], %77 {strides = array<i32>} : memref<3x4x8x8xbf16, #tpu.memory_space<vmem>>, vector<1x1x8x8xbf16>,
    %c0_i32_58 = arith.constant 0 : i32
    %c4_i32 = arith.constant 4 : i32
    %78 = arith.addi %c0_i32_58, %c4_i32 : i32
    %c1_i32 = arith.constant 1 : i32
    scf.for %arg15 = %c0_i32_58 to %78 step %c1_i32  : i32 {
      %c0_105 = arith.constant 0 : index
      %141 = arith.index_cast %arg15 : i32 to index
      %c0_106 = arith.constant 0 : index
      %c0_107 = arith.constant 0 : index
      %142 = vector.load %arg12[%c0_105, %141, %c0_106, %c0_107] : memref<3x4x8x8xbf16, #tpu.memory_space<vmem>>, vector<1x1x8x8xbf16>
      %143 = vector.shape_cast %142 : vector<1x1x8x8xbf16> to vector<8x8xbf16>
      %c1_108 = arith.constant 1 : index
      %144 = arith.index_cast %arg15 : i32 to index
      %c0_109 = arith.constant 0 : index
      %c0_110 = arith.constant 0 : index
      %145 = vector.load %arg12[%c1_108, %144, %c0_109, %c0_110] : memref<3x4x8x8xbf16, #tpu.memory_space<vmem>>, vector<1x1x8x8xbf16>
      %146 = vector.shape_cast %145 : vector<1x1x8x8xbf16> to vector<8x8xbf16>
      %c2_111 = arith.constant 2 : index
      %147 = arith.index_cast %arg15 : i32 to index
      %c0_112 = arith.constant 0 : index
      %c0_113 = arith.constant 0 : index
      %148 = vector.load %arg12[%c2_111, %147, %c0_112, %c0_113] : memref<3x4x8x8xbf16, #tpu.memory_space<vmem>>, vector<1x1x8x8xbf16>
      %149 = vector.shape_cast %148 : vector<1x1x8x8xbf16> to vector<8x8xbf16>
      %cst_114 = arith.constant dense<0.000000e+00> : vector<8x8xf32>
      %150 = tpu.matmul %143, %146, %cst_114 {dimension_numbers = #tpu.dot_dimension_numbers<[1], [1], [0], [0], [0, 0, 1, 0], [], []>} : vector<8x8xbf16>, vector<8x8xbf16>, vector<8x8xf32> -> vector<8x8xf32>
      %151 = vector.broadcast %10 : vector<1x8xf32> to vector<8x8xf32>
      %152 = arith.addf %150, %151 : vector<8x8xf32>
      %cst_115 = arith.constant dense<0xFF800000> : vector<8xf32>
      %153 = vector.multi_reduction <maximumf>, %152, %cst_115 [1] : vector<8x8xf32> to vector<8xf32>
      %154 = vector.shape_cast %153 : vector<8xf32> to vector<8x1xf32>
      %155 = vector.broadcast %154 : vector<8x1xf32> to vector<8x8xf32>
      %156 = arith.subf %152, %155 : vector<8x8xf32>
      %157 = math.exp %156 : vector<8x8xf32>
      %cst_116 = arith.constant dense<0.000000e+00> : vector<8xf32>
      %158 = vector.multi_reduction <add>, %157, %cst_116 [1] : vector<8x8xf32> to vector<8xf32>
      %159 = vector.shape_cast %158 : vector<8xf32> to vector<8x1xf32>
      %160 = tpu.reciprocal %159 {approx = true} : vector<8x1xf32> -> vector<8x1xf32>
      %161 = vector.broadcast %160 : vector<8x1xf32> to vector<8x8xf32>
      %162 = arith.mulf %157, %161 : vector<8x8xf32>
      %163 = arith.truncf %162 : vector<8x8xf32> to vector<8x8xbf16>
      %cst_117 = arith.constant dense<0.000000e+00> : vector<8x8xf32>
      %164 = tpu.matmul %163, %149, %cst_117 {dimension_numbers = #tpu.dot_dimension_numbers<[1], [0], [0], [1], [0, 0, 1, 1], [], []>} : vector<8x8xbf16>, vector<8x8xbf16>, vector<8x8xf32> -> vector<8x8xf32>
      %165 = arith.truncf %164 : vector<8x8xf32> to vector<8x8xbf16>
      %166 = arith.index_cast %arg15 : i32 to index
      %c0_118 = arith.constant 0 : index
      %c0_119 = arith.constant 0 : index
      %167 = vector.load %arg13[%166, %c0_118, %c0_119] : memref<4x8x8xbf16, #tpu.memory_space<vmem>>, vector<1x8x8xbf16>
      %168 = vector.shape_cast %167 : vector<1x8x8xbf16> to vector<8x8xbf16>
      %169 = vector.shape_cast %165 : vector<8x8xbf16> to vector<1x8x8xbf16>
      tpu.vector_store %arg13[%166, %c0_118, %c0_119], %169 {strides = array<i32>} : memref<4x8x8xbf16, #tpu.memory_space<vmem>>, vector<1x8x8xbf16>,
    }
    %c4_i32_59 = arith.constant 4 : i32
    %c0_60 = arith.constant 0 : index
    %c0_61 = arith.constant 0 : index
    %c0_62 = arith.constant 0 : index
    %79 = vector.load %arg13[%c0_60, %c0_61, %c0_62] : memref<4x8x8xbf16, #tpu.memory_space<vmem>>, vector<1x8x8xbf16>
    %80 = vector.shape_cast %79 : vector<1x8x8xbf16> to vector<8x8xbf16>
    %c0_63 = arith.constant 0 : index
    %c0_64 = arith.constant 0 : index
    %81 = vector.load %arg14[%c0_63, %c0_64] : memref<8x32xbf16, #tpu.memory_space<vmem>>, vector<8x8xbf16>
    tpu.vector_store %arg14[%c0_63, %c0_64], %80 {strides = array<i32>} : memref<8x32xbf16, #tpu.memory_space<vmem>>, vector<8x8xbf16>,
    %c1_65 = arith.constant 1 : index
    %c0_66 = arith.constant 0 : index
    %c0_67 = arith.constant 0 : index
    %82 = vector.load %arg13[%c1_65, %c0_66, %c0_67] : memref<4x8x8xbf16, #tpu.memory_space<vmem>>, vector<1x8x8xbf16>
    %83 = vector.shape_cast %82 : vector<1x8x8xbf16> to vector<8x8xbf16>
    %c0_68 = arith.constant 0 : index
    %c8 = arith.constant 8 : index
    %84 = vector.load %arg14[%c0_68, %c8] : memref<8x32xbf16, #tpu.memory_space<vmem>>, vector<8x8xbf16>
    tpu.vector_store %arg14[%c0_68, %c8], %83 {strides = array<i32>} : memref<8x32xbf16, #tpu.memory_space<vmem>>, vector<8x8xbf16>,
    %c2_69 = arith.constant 2 : index
    %c0_70 = arith.constant 0 : index
    %c0_71 = arith.constant 0 : index
    %85 = vector.load %arg13[%c2_69, %c0_70, %c0_71] : memref<4x8x8xbf16, #tpu.memory_space<vmem>>, vector<1x8x8xbf16>
    %86 = vector.shape_cast %85 : vector<1x8x8xbf16> to vector<8x8xbf16>
    %c0_72 = arith.constant 0 : index
    %c16 = arith.constant 16 : index
    %87 = vector.load %arg14[%c0_72, %c16] : memref<8x32xbf16, #tpu.memory_space<vmem>>, vector<8x8xbf16>
    tpu.vector_store %arg14[%c0_72, %c16], %86 {strides = array<i32>} : memref<8x32xbf16, #tpu.memory_space<vmem>>, vector<8x8xbf16>,
    %c3_73 = arith.constant 3 : index
    %c0_74 = arith.constant 0 : index
    %c0_75 = arith.constant 0 : index
    %88 = vector.load %arg13[%c3_73, %c0_74, %c0_75] : memref<4x8x8xbf16, #tpu.memory_space<vmem>>, vector<1x8x8xbf16>
    %89 = vector.shape_cast %88 : vector<1x8x8xbf16> to vector<8x8xbf16>
    %c0_76 = arith.constant 0 : index
    %c24 = arith.constant 24 : index
    %90 = vector.load %arg14[%c0_76, %c24] : memref<8x32xbf16, #tpu.memory_space<vmem>>, vector<8x8xbf16>
    tpu.vector_store %arg14[%c0_76, %c24], %89 {strides = array<i32>} : memref<8x32xbf16, #tpu.memory_space<vmem>>, vector<8x8xbf16>,
    %c0_77 = arith.constant 0 : index
    %c0_78 = arith.constant 0 : index
    %91 = vector.load %arg14[%c0_77, %c0_78] : memref<8x32xbf16, #tpu.memory_space<vmem>>, vector<8x32xbf16>
    %c0_79 = arith.constant 0 : index
    %c0_80 = arith.constant 0 : index
    %c0_81 = arith.constant 0 : index
    %92 = vector.load %arg6[%c0_79, %c0_80, %c0_81] : memref<1x32x32xbf16, #tpu.memory_space<vmem>>, vector<1x32x32xbf16>
    %93 = vector.shape_cast %92 : vector<1x32x32xbf16> to vector<32x32xbf16>
    %cst_82 = arith.constant dense<0.000000e+00> : vector<8x32xf32>
    %94 = tpu.matmul %91, %93, %cst_82 {dimension_numbers = #tpu.dot_dimension_numbers<[1], [0], [0], [1], [0, 0, 1, 1], [], []>} : vector<8x32xbf16>, vector<32x32xbf16>, vector<8x32xf32> -> vector<8x32xf32>
    %c0_83 = arith.constant 0 : index
    %c0_84 = arith.constant 0 : index
    %c0_85 = arith.constant 0 : index
    %95 = vector.load %arg7[%c0_83, %c0_84, %c0_85] : memref<1x1x32xf32, #tpu.memory_space<vmem>>, vector<1x1x32xf32>
    %96 = vector.shape_cast %95 : vector<1x1x32xf32> to vector<1x32xf32>
    %97 = vector.broadcast %96 : vector<1x32xf32> to vector<8x32xf32>
    %98 = arith.addf %94, %97 : vector<8x32xf32>
    %cst_86 = arith.constant 5.000000e-01 : f32
    %99 = vector.broadcast %cst_86 : f32 to vector<8x32xf32>
    %100 = arith.mulf %99, %98 : vector<8x32xf32>
    %101 = arith.mulf %98, %98 : vector<8x32xf32>
    %102 = arith.mulf %101, %98 : vector<8x32xf32>
    %cst_87 = arith.constant 4.471500e-02 : f32
    %103 = vector.broadcast %cst_87 : f32 to vector<8x32xf32>
    %104 = arith.mulf %103, %102 : vector<8x32xf32>
    %105 = arith.addf %98, %104 : vector<8x32xf32>
    %cst_88 = arith.constant 0.797884583 : f32
    %106 = vector.broadcast %cst_88 : f32 to vector<8x32xf32>
    %107 = arith.mulf %106, %105 : vector<8x32xf32>
    %108 = math.tanh %107 : vector<8x32xf32>
    %cst_89 = arith.constant 1.000000e+00 : f32
    %109 = vector.broadcast %cst_89 : f32 to vector<8x32xf32>
    %110 = arith.addf %109, %108 : vector<8x32xf32>
    %111 = arith.mulf %100, %110 : vector<8x32xf32>
    %112 = arith.addf %3, %111 : vector<8x32xf32>
    %cst_90 = arith.constant dense<0.000000e+00> : vector<8xf32>
    %113 = vector.multi_reduction <add>, %112, %cst_90 [1] : vector<8x32xf32> to vector<8xf32>
    %114 = vector.shape_cast %113 : vector<8xf32> to vector<8x1xf32>
    %cst_91 = arith.constant 3.200000e+01 : f32
    %115 = vector.broadcast %cst_91 : f32 to vector<8x1xf32>
    %116 = arith.divf %114, %115 : vector<8x1xf32>
    %117 = vector.broadcast %116 : vector<8x1xf32> to vector<8x32xf32>
    %118 = arith.subf %112, %117 : vector<8x32xf32>
    %119 = arith.mulf %118, %118 : vector<8x32xf32>
    %cst_92 = arith.constant dense<0.000000e+00> : vector<8xf32>
    %120 = vector.multi_reduction <add>, %119, %cst_92 [1] : vector<8x32xf32> to vector<8xf32>
    %121 = vector.shape_cast %120 : vector<8xf32> to vector<8x1xf32>
    %cst_93 = arith.constant 3.200000e+01 : f32
    %122 = vector.broadcast %cst_93 : f32 to vector<8x1xf32>
    %123 = arith.divf %121, %122 : vector<8x1xf32>
    %cst_94 = arith.constant 1.000000e-10 : f32
    %124 = vector.broadcast %cst_94 : f32 to vector<8x1xf32>
    %125 = arith.addf %123, %124 : vector<8x1xf32>
    %126 = math.rsqrt %125 : vector<8x1xf32>
    %127 = vector.broadcast %126 : vector<8x1xf32> to vector<8x32xf32>
    %128 = arith.mulf %118, %127 : vector<8x32xf32>
    %c0_95 = arith.constant 0 : index
    %c0_96 = arith.constant 0 : index
    %c0_97 = arith.constant 0 : index
    %129 = vector.load %arg8[%c0_95, %c0_96, %c0_97] : memref<1x1x32xf32, #tpu.memory_space<vmem>>, vector<1x1x32xf32>
    %130 = vector.shape_cast %129 : vector<1x1x32xf32> to vector<1x32xf32>
    %131 = vector.broadcast %130 : vector<1x32xf32> to vector<8x32xf32>
    %132 = arith.mulf %128, %131 : vector<8x32xf32>
    %c0_98 = arith.constant 0 : index
    %c0_99 = arith.constant 0 : index
    %c0_100 = arith.constant 0 : index
    %133 = vector.load %arg9[%c0_98, %c0_99, %c0_100] : memref<1x1x32xf32, #tpu.memory_space<vmem>>, vector<1x1x32xf32>
    %134 = vector.shape_cast %133 : vector<1x1x32xf32> to vector<1x32xf32>
    %135 = vector.broadcast %134 : vector<1x32xf32> to vector<8x32xf32>
    %136 = arith.addf %132, %135 : vector<8x32xf32>
    %c0_101 = arith.constant 0 : index
    %c0_102 = arith.constant 0 : index
    %137 = vector.load %arg11[%c0_101, %c0_102] : memref<8x32xf32, #tpu.memory_space<vmem>>, vector<8x32xf32>
    tpu.vector_store %arg11[%c0_101, %c0_102], %136 {strides = array<i32>} : memref<8x32xf32, #tpu.memory_space<vmem>>, vector<8x32xf32>,
    %c1_i32_103 = arith.constant 1 : i32
    %138 = arith.cmpi eq, %arg1, %c1_i32_103 : i32
    %139 = arith.extui %138 : i1 to i32
    %c0_i32_104 = arith.constant 0 : i32
    %140 = arith.cmpi ne, %139, %c0_i32_104 : i32
    scf.if %140 {
      %c0_105 = arith.constant 0 : index
      %c0_106 = arith.constant 0 : index
      %c0_107 = arith.constant 0 : index
      %141 = vector.load %arg10[%c0_105, %c0_106, %c0_107] : memref<1x8x32xf32, #tpu.memory_space<vmem>>, vector<1x8x32xf32>
      %142 = vector.shape_cast %141 : vector<1x8x32xf32> to vector<8x32xf32>
      %143 = vector.shape_cast %136 : vector<8x32xf32> to vector<1x8x32xf32>
      tpu.vector_store %arg10[%c0_105, %c0_106, %c0_107], %143 {strides = array<i32>} : memref<1x8x32xf32, #tpu.memory_space<vmem>>, vector<1x8x32xf32>,
    } else {
    }
    return
  }
  func.func @transform_0(%arg0: i32, %arg1: i32) -> (i32, i32, i32) {
    %c0_i32 = arith.constant 0 : i32
    %c0_i32_0 = arith.constant 0 : i32
    %c0_i32_1 = arith.constant 0 : i32
    return %arg0, %c0_i32, %c0_i32_0 : i32, i32, i32
  }
  func.func @transform_1(%arg0: i32, %arg1: i32) -> (i32, i32, i32) {
    %c0_i32 = arith.constant 0 : i32
    %c0_i32_0 = arith.constant 0 : i32
    %c0_i32_1 = arith.constant 0 : i32
    return %arg0, %c0_i32, %c0_i32_0 : i32, i32, i32
  }
  func.func @transform_2(%arg0: i32, %arg1: i32) -> (i32, i32, i32) {
    %c0_i32 = arith.constant 0 : i32
    %c0_i32_0 = arith.constant 0 : i32
    %c0_i32_1 = arith.constant 0 : i32
    return %arg1, %c0_i32, %c0_i32_0 : i32, i32, i32
  }
  func.func @transform_3(%arg0: i32, %arg1: i32) -> (i32, i32, i32) {
    %c0_i32 = arith.constant 0 : i32
    %c0_i32_0 = arith.constant 0 : i32
    %c0_i32_1 = arith.constant 0 : i32
    return %arg1, %c0_i32, %c0_i32_0 : i32, i32, i32
  }
  func.func @transform_4(%arg0: i32, %arg1: i32) -> (i32, i32, i32) {
    %c0_i32 = arith.constant 0 : i32
    %c0_i32_0 = arith.constant 0 : i32
    %c0_i32_1 = arith.constant 0 : i32
    return %arg1, %c0_i32, %c0_i32_0 : i32, i32, i32
  }
  func.func @transform_5(%arg0: i32, %arg1: i32) -> (i32, i32, i32) {
    %c0_i32 = arith.constant 0 : i32
    %c0_i32_0 = arith.constant 0 : i32
    %c0_i32_1 = arith.constant 0 : i32
    return %arg1, %c0_i32, %c0_i32_0 : i32, i32, i32
  }
  func.func @transform_6(%arg0: i32, %arg1: i32) -> (i32, i32, i32) {
    %c0_i32 = arith.constant 0 : i32
    %c0_i32_0 = arith.constant 0 : i32
    %c0_i32_1 = arith.constant 0 : i32
    return %arg1, %c0_i32, %c0_i32_0 : i32, i32, i32
  }
  func.func @transform_7(%arg0: i32, %arg1: i32) -> (i32, i32, i32) {
    %c0_i32 = arith.constant 0 : i32
    %c0_i32_0 = arith.constant 0 : i32
    %c0_i32_1 = arith.constant 0 : i32
    return %arg1, %c0_i32, %c0_i32_0 : i32, i32, i32
  }
  func.func @transform_8(%arg0: i32, %arg1: i32) -> (i32, i32, i32) {
    %c0_i32 = arith.constant 0 : i32
    %c0_i32_0 = arith.constant 0 : i32
    %c0_i32_1 = arith.constant 0 : i32
    return %arg0, %c0_i32, %c0_i32_0 : i32, i32, i32
  }
}

</mosaic_0001>

<llo_original>
// kernel: tpu_custom_call.1
$region0: #{tpu_custom_call.1}
  #allocation0 [shape = 'u32[]', space=smem, size = 0x4, offset = 0x4, fixed_abs, tag = 'smem constant byte address 0x4 - core index']
  #allocation1 [shape = 'u32[144,128]{1,0:T(1,128)}', space=vmem, size = 0x12000, scoped, tag = 'internal scratch']
  #allocation2 [shape = 'f32[8,32]{1,0:T(8,128)}', space=vmem, size = 0x1000, scoped, tag = 'scratch operand']
  #allocation3 [shape = 'bf16[3,4,8,8]{3,2,1,0:T(8,128)(2,1)}', space=vmem, size = 0x6000, scoped, tag = 'scratch operand']
  #allocation4 [shape = 'bf16[4,8,8]{2,1,0:T(8,128)(2,1)}', space=vmem, size = 0x2000, scoped, tag = 'scratch operand']
  #allocation5 [shape = 'bf16[8,32]{1,0:T(8,128)(2,1)}', space=vmem, size = 0x800, scoped, tag = 'scratch operand']
  %s0 = inlined_call_operand.hbm [shape: bf16[2,8,32], index: 0, kind: input, shape index: {}]
  %s1 = inlined_call_operand.vmem [shape: f32[2,1,8], index: 1, kind: input, shape index: {}]
  %s2 = inlined_call_operand.hbm [shape: bf16[2,32,96], index: 2, kind: input, shape index: {}]
  %s3 = inlined_call_operand.vmem [shape: f32[2,1,96], index: 3, kind: input, shape index: {}]
  %s4 = inlined_call_operand.hbm [shape: bf16[2,32,32], index: 4, kind: input, shape index: {}]
  %s5 = inlined_call_operand.vmem [shape: f32[2,1,32], index: 5, kind: input, shape index: {}]
  %s6 = inlined_call_operand.vmem [shape: f32[2,1,32], index: 6, kind: input, shape index: {}]
  %s7 = inlined_call_operand.vmem [shape: f32[2,1,32], index: 7, kind: input, shape index: {}]
  %s8 = inlined_call_operand.hbm [shape: f32[2,8,32], index: 8, kind: output, shape index: {}]
  %s9 = sld [smem:[#allocation0]]
  $region92: #{tpu_custom_call.1} parent=0
    _
  %s11 = ssub.s32 1, %s9
  %s12 = scalar_select 0, %s11, %s9
  $region1: #{tpu_custom_call.1} parent=0
    #allocation6 [shape = 'u8[4096]{0}', space=vmem, size = 0x1000, scoped, tag = 'input window, operand 0']
    #allocation7 [shape = 's32[2]{0}', space=sflag, size = 0x8, scoped, tag = 'scoped memory for tpu_custom_call.1']
    #allocation8 [shape = 's32[2]{0}', space=sflag, size = 0x8, scoped, tag = 'scoped memory for tpu_custom_call.1']
    #allocation9 [shape = 'u8[16384]{0}', space=vmem, size = 0x4000, scoped, tag = 'input window, operand 2']
    #allocation10 [shape = 's32[2]{0}', space=sflag, size = 0x8, scoped, tag = 'scoped memory for tpu_custom_call.1']
    #allocation11 [shape = 'u8[16384]{0}', space=vmem, size = 0x4000, scoped, tag = 'input window, operand 4']
    #allocation12 [shape = 'u8[8192]{0}', space=vmem, size = 0x2000, scoped, tag = 'output window, operand 0']
    %13 = vsyncpa [#allocation7], 0
    %s14 = scalar_lea.sflag [#allocation7], 1
    %15 = vsyncpa %s14, 0
    %16 = vsyncpa [#allocation10], 0
    %s17 = scalar_lea.sflag [#allocation10], 1
    %18 = vsyncpa %s17, 0
    %19 = vsyncpa [#allocation8], 0
    %s20 = scalar_lea.sflag [#allocation8], 1
    %21 = vsyncpa %s20, 0
    loop: start=0, step=1, limit=6
    $region2: #{tpu_custom_call.1} parent=1 // loop_pre_header
      _
    $region3: #{tpu_custom_call.1} parent=1 // loop_header
      %s23 = sphi 0, %s27
      %p24 = scmp.ge.s32.totalorder %s23, 6
      %s30 = sphi 0, %s42
      %s31 = sphi 0, %s38
      %s32 = sphi 0, %s30
      %s33 = sphi 0, %s31
      %s34 = sphi 0, %s32
      %s35 = sphi 0, %s33
      %s45 = sphi 0, %s47
      %s48 = sphi 0, %s45
      %s49 = sphi 0, %s48
      %s65 = sphi 0, %s49
      %s71 = sphi 0, %s73
      %s74 = sphi 0, %s71
      %s75 = sphi 0, %s74
      %s91 = sphi 0, %s75
      %s97 = sphi 0, %s99
      %s100 = sphi 0, %s97
      %s101 = sphi 0, %s100
      %s117 = sphi 0, %s101
      %s123 = sphi 0, %s125
      %s126 = sphi 0, %s123
      %s127 = sphi 0, %s126
      %s143 = sphi 0, %s127
      %s149 = sphi 0, %s151
      %s152 = sphi 0, %s149
      %s153 = sphi 0, %s152
      %s169 = sphi 0, %s153
      %s175 = sphi 0, %s177
      %s178 = sphi 0, %s175
      %s179 = sphi 0, %s178
      %s195 = sphi 0, %s179
      %s201 = sphi 0, %s203
      %s204 = sphi 0, %s201
      %s205 = sphi 0, %s204
      %s221 = sphi 0, %s205
      %s227 = sphi 0, %s229
      %s230 = sphi 0, %s227
      %s231 = sphi 0, %s230
      %s247 = sphi 0, %s231
      %s253 = sphi 0, %s255
      %s256 = sphi 0, %s253
      %s257 = sphi 0, %s256
      %s273 = sphi 0, %s257
    $region4: #{tpu_custom_call.1} parent=1 // loop_header_branch
      %26 = sbr.rel (%p24) target = $region8
    $region5: #{tpu_custom_call.1} parent=1 // loop_body
      %s28 = ssub.s32 %s23, 1
      %s29 = ssub.s32 %s23, 2
      %s36 = sadd.s32 1, %s31
      %p37 = scmp.ge.s32.totalorder %s36, 2
      %s38 = scalar_select %p37, 0, %s36
      %s39 = sadd.s32 1, %s30
      %s40 = scalar_select %p37, %s39, %s30
      %p41 = scmp.ge.s32.totalorder %s40, 2
      %s42 = scalar_select %p41, 0, %s40
      %s43 = ssub.s32 %s30, %s42
      %p44 = scmp.eq.s32.totalorder %s43, 0
      %s46 = sadd.s32 %s45, 1
      %s47 = scalar_select %p44, %s45, %s46
      %p50 = pneg %p44
      %p51 = scmp.eq.s32.totalorder %s23, 3
      %p52 = por %p50, %p51
      %p53 = scmp.ne.s32.totalorder %s45, %s48
      %p54 = scmp.eq.s32.totalorder %s23, 0
      %p55 = por %p53, %p54
      %p56 = scmp.ne.s32.totalorder %s45, %s48
      %p57 = scmp.eq.s32.totalorder %s28, 3
      %p58 = por %p56, %p57
      %p59 = scmp.ne.s32.totalorder %s48, %s49
      %p60 = scmp.eq.s32.totalorder %s28, 0
      %p61 = por %p59, %p60
      %p62 = scmp.ne.s32.totalorder %s48, %s49
      %p63 = scmp.eq.s32.totalorder %s29, 3
      %p64 = por %p62, %p63
      %p66 = scmp.ne.s32.totalorder %s49, %s65
      %p67 = scmp.eq.s32.totalorder %s29, 0
      %p68 = por %p66, %p67
      %s69 = ssub.s32 %s30, %s42
      %p70 = scmp.eq.s32.totalorder %s69, 0
      %s72 = sadd.s32 %s71, 1
      %s73 = scalar_select %p70, %s71, %s72
      %p76 = pneg %p70
      %p77 = scmp.eq.s32.totalorder %s23, 3
      %p78 = por %p76, %p77
      %p79 = scmp.ne.s32.totalorder %s71, %s74
      %p80 = scmp.eq.s32.totalorder %s23, 0
      %p81 = por %p79, %p80
      %p82 = scmp.ne.s32.totalorder %s71, %s74
      %p83 = scmp.eq.s32.totalorder %s28, 3
      %p84 = por %p82, %p83
      %p85 = scmp.ne.s32.totalorder %s74, %s75
      %p86 = scmp.eq.s32.totalorder %s28, 0
      %p87 = por %p85, %p86
      %p88 = scmp.ne.s32.totalorder %s74, %s75
      %p89 = scmp.eq.s32.totalorder %s29, 3
      %p90 = por %p88, %p89
      %p92 = scmp.ne.s32.totalorder %s75, %s91
      %p93 = scmp.eq.s32.totalorder %s29, 0
      %p94 = por %p92, %p93
      %s95 = ssub.s32 %s31, %s38
      %p96 = scmp.eq.s32.totalorder %s95, 0
      %s98 = sadd.s32 %s97, 1
      %s99 = scalar_select %p96, %s97, %s98
      %p102 = pneg %p96
      %p103 = scmp.eq.s32.totalorder %s23, 3
      %p104 = por %p102, %p103
      %p105 = scmp.ne.s32.totalorder %s97, %s100
      %p106 = scmp.eq.s32.totalorder %s23, 0
      %p107 = por %p105, %p106
      %p108 = scmp.ne.s32.totalorder %s97, %s100
      %p109 = scmp.eq.s32.totalorder %s28, 3
      %p110 = por %p108, %p109
      %p111 = scmp.ne.s32.totalorder %s100, %s101
      %p112 = scmp.eq.s32.totalorder %s28, 0
      %p113 = por %p111, %p112
      %p114 = scmp.ne.s32.totalorder %s100, %s101
      %p115 = scmp.eq.s32.totalorder %s29, 3
      %p116 = por %p114, %p115
      %p118 = scmp.ne.s32.totalorder %s101, %s117
      %p119 = scmp.eq.s32.totalorder %s29, 0
      %p120 = por %p118, %p119
      %s121 = ssub.s32 %s31, %s38
      %p122 = scmp.eq.s32.totalorder %s121, 0
      %s124 = sadd.s32 %s123, 1
      %s125 = scalar_select %p122, %s123, %s124
      %p128 = pneg %p122
      %p129 = scmp.eq.s32.totalorder %s23, 3
      %p130 = por %p128, %p129
      %p131 = scmp.ne.s32.totalorder %s123, %s126
      %p132 = scmp.eq.s32.totalorder %s23, 0
      %p133 = por %p131, %p132
      %p134 = scmp.ne.s32.totalorder %s123, %s126
      %p135 = scmp.eq.s32.totalorder %s28, 3
      %p136 = por %p134, %p135
      %p137 = scmp.ne.s32.totalorder %s126, %s127
      %p138 = scmp.eq.s32.totalorder %s28, 0
      %p139 = por %p137, %p138
      %p140 = scmp.ne.s32.totalorder %s126, %s127
      %p141 = scmp.eq.s32.totalorder %s29, 3
      %p142 = por %p140, %p141
      %p144 = scmp.ne.s32.totalorder %s127, %s143
      %p145 = scmp.eq.s32.totalorder %s29, 0
      %p146 = por %p144, %p145
      %s147 = ssub.s32 %s31, %s38
      %p148 = scmp.eq.s32.totalorder %s147, 0
      %s150 = sadd.s32 %s149, 1
      %s151 = scalar_select %p148, %s149, %s150
      %p154 = pneg %p148
      %p155 = scmp.eq.s32.totalorder %s23, 3
      %p156 = por %p154, %p155
      %p157 = scmp.ne.s32.totalorder %s149, %s152
      %p158 = scmp.eq.s32.totalorder %s23, 0
      %p159 = por %p157, %p158
      %p160 = scmp.ne.s32.totalorder %s149, %s152
      %p161 = scmp.eq.s32.totalorder %s28, 3
      %p162 = por %p160, %p161
      %p163 = scmp.ne.s32.totalorder %s152, %s153
      %p164 = scmp.eq.s32.totalorder %s28, 0
      %p165 = por %p163, %p164
      %p166 = scmp.ne.s32.totalorder %s152, %s153
      %p167 = scmp.eq.s32.totalorder %s29, 3
      %p168 = por %p166, %p167
      %p170 = scmp.ne.s32.totalorder %s153, %s169
      %p171 = scmp.eq.s32.totalorder %s29, 0
      %p172 = por %p170, %p171
      %s173 = ssub.s32 %s31, %s38
      %p174 = scmp.eq.s32.totalorder %s173, 0
      %s176 = sadd.s32 %s175, 1
      %s177 = scalar_select %p174, %s175, %s176
      %p180 = pneg %p174
      %p181 = scmp.eq.s32.totalorder %s23, 3
      %p182 = por %p180, %p181
      %p183 = scmp.ne.s32.totalorder %s175, %s178
      %p184 = scmp.eq.s32.totalorder %s23, 0
      %p185 = por %p183, %p184
      %p186 = scmp.ne.s32.totalorder %s175, %s178
      %p187 = scmp.eq.s32.totalorder %s28, 3
      %p188 = por %p186, %p187
      %p189 = scmp.ne.s32.totalorder %s178, %s179
      %p190 = scmp.eq.s32.totalorder %s28, 0
      %p191 = por %p189, %p190
      %p192 = scmp.ne.s32.totalorder %s178, %s179
      %p193 = scmp.eq.s32.totalorder %s29, 3
      %p194 = por %p192, %p193
      %p196 = scmp.ne.s32.totalorder %s179, %s195
      %p197 = scmp.eq.s32.totalorder %s29, 0
      %p198 = por %p196, %p197
      %s199 = ssub.s32 %s31, %s38
      %p200 = scmp.eq.s32.totalorder %s199, 0
      %s202 = sadd.s32 %s201, 1
      %s203 = scalar_select %p200, %s201, %s202
      %p206 = pneg %p200
      %p207 = scmp.eq.s32.totalorder %s23, 3
      %p208 = por %p206, %p207
      %p209 = scmp.ne.s32.totalorder %s201, %s204
      %p210 = scmp.eq.s32.totalorder %s23, 0
      %p211 = por %p209, %p210
      %p212 = scmp.ne.s32.totalorder %s201, %s204
      %p213 = scmp.eq.s32.totalorder %s28, 3
      %p214 = por %p212, %p213
      %p215 = scmp.ne.s32.totalorder %s204, %s205
      %p216 = scmp.eq.s32.totalorder %s28, 0
      %p217 = por %p215, %p216
      %p218 = scmp.ne.s32.totalorder %s204, %s205
      %p219 = scmp.eq.s32.totalorder %s29, 3
      %p220 = por %p218, %p219
      %p222 = scmp.ne.s32.totalorder %s205, %s221
      %p223 = scmp.eq.s32.totalorder %s29, 0
      %p224 = por %p222, %p223
      %s225 = ssub.s32 %s31, %s38
      %p226 = scmp.eq.s32.totalorder %s225, 0
      %s228 = sadd.s32 %s227, 1
      %s229 = scalar_select %p226, %s227, %s228
      %p232 = pneg %p226
      %p233 = scmp.eq.s32.totalorder %s23, 3
      %p234 = por %p232, %p233
      %p235 = scmp.ne.s32.totalorder %s227, %s230
      %p236 = scmp.eq.s32.totalorder %s23, 0
      %p237 = por %p235, %p236
      %p238 = scmp.ne.s32.totalorder %s227, %s230
      %p239 = scmp.eq.s32.totalorder %s28, 3
      %p240 = por %p238, %p239
      %p241 = scmp.ne.s32.totalorder %s230, %s231
      %p242 = scmp.eq.s32.totalorder %s28, 0
      %p243 = por %p241, %p242
      %p244 = scmp.ne.s32.totalorder %s230, %s231
      %p245 = scmp.eq.s32.totalorder %s29, 3
      %p246 = por %p244, %p245
      %p248 = scmp.ne.s32.totalorder %s231, %s247
      %p249 = scmp.eq.s32.totalorder %s29, 0
      %p250 = por %p248, %p249
      %s251 = ssub.s32 %s30, %s42
      %p252 = scmp.eq.s32.totalorder %s251, 0
      %s254 = sadd.s32 %s253, 1
      %s255 = scalar_select %p252, %s253, %s254
      %p258 = pneg %p252
      %p259 = scmp.eq.s32.totalorder %s23, 3
      %p260 = por %p258, %p259
      %p261 = scmp.ne.s32.totalorder %s253, %s256
      %p262 = scmp.eq.s32.totalorder %s23, 0
      %p263 = por %p261, %p262
      %p264 = scmp.ne.s32.totalorder %s253, %s256
      %p265 = scmp.eq.s32.totalorder %s28, 3
      %p266 = por %p264, %p265
      %p267 = scmp.ne.s32.totalorder %s256, %s257
      %p268 = scmp.eq.s32.totalorder %s28, 0
      %p269 = por %p267, %p268
      %p270 = scmp.ne.s32.totalorder %s256, %s257
      %p271 = scmp.eq.s32.totalorder %s29, 3
      %p272 = por %p270, %p271
      %p274 = scmp.ne.s32.totalorder %s257, %s273
      %p275 = scmp.eq.s32.totalorder %s29, 0
      %p276 = por %p274, %p275
      %p277 = scmp.le.s32.totalorder 1, %s23
      %p278 = scmp.lt.s32.totalorder %s23, 5
      %p279 = pnand %p277, %p278
      %p280 = pneg %p279
      // Predicated region
      $region9: #{tpu_custom_call.1} parent=5 // pred_check
        _
      $region10: #{tpu_custom_call.1} parent=5 // pred_check_branch
        %282 = sbr.rel (%p279) target = $region12
      $region11: #{tpu_custom_call.1} parent=5 // pred_region
        %s283 = ssub.s32 %s23, 1
      $region12: #{tpu_custom_call.1} parent=5 // pred_fallthru
        _
      %p284 = scmp.lt.s32.totalorder %s23, 4
      // Predicated region
      $region13: #{tpu_custom_call.1} parent=5 // pred_check
        %p285 = pneg %p284
      $region14: #{tpu_custom_call.1} parent=5 // pred_check_branch
        %287 = sbr.rel (%p285) target = $region16
      $region15: #{tpu_custom_call.1} parent=5 // pred_region
        // Predicated region
        $region17: #{tpu_custom_call.1} parent=15 // pred_check
          %p288 = pneg %p55
        $region18: #{tpu_custom_call.1} parent=15 // pred_check_branch
          %290 = sbr.rel (%p288) target = $region20
        $region19: #{tpu_custom_call.1} parent=15 // pred_region
          %s291 = sand.u32 %s45, 1
          %s292 = scalar_lea.sflag [#allocation7], %s291
          %s293 = sand.u32 %s45, 1
          %s294 = smul.addr %s293, 4
          %s295 = scalar_lea.vmem [#allocation6], %s294
          %s297 = ssub.s32 64, 64
          %298 = vsyncadd %s292, %s297
          %s299 = smul.addr %s30, 64
          %s300 = scalar_lea.hbm %s0, %s299
          %s302 = sshll.u32 %s295, 4
          %s303 = int_to_ptr.vmem [resolvable:$true] %s302
          %305 = dma.hbm_to_vmem [thread:$0]  %s300, 64, %s303, %s292
        $region20: #{tpu_custom_call.1} parent=15 // pred_fallthru
          _
        // Predicated region
        $region21: #{tpu_custom_call.1} parent=15 // pred_check
          %p306 = pneg %p81
        $region22: #{tpu_custom_call.1} parent=15 // pred_check_branch
          %308 = sbr.rel (%p306) target = $region24
        $region23: #{tpu_custom_call.1} parent=15 // pred_region
          %p309 = scmp.lt.s32.totalorder %s30, 1
          %s310 = scalar_select %p309, %s30, 1
          %s311 = scalar_lea.vmem %s1, %s310
        $region24: #{tpu_custom_call.1} parent=15 // pred_fallthru
          _
        // Predicated region
        $region25: #{tpu_custom_call.1} parent=15 // pred_check
          %p312 = pneg %p107
        $region26: #{tpu_custom_call.1} parent=15 // pred_check_branch
          %314 = sbr.rel (%p312) target = $region28
        $region27: #{tpu_custom_call.1} parent=15 // pred_region
          %s315 = sand.u32 %s23, 1
          %s316 = scalar_lea.sflag [#allocation10], %s315
          %s317 = sand.u32 %s97, 1
          %s318 = smul.addr %s317, 16
          %s319 = scalar_lea.vmem [#allocation9], %s318
          %s321 = ssub.s32 256, 256
          %322 = vsyncadd %s316, %s321
          %s323 = smul.addr %s31, 4
          %s324 = smul.addr %s323, 64
          %s325 = scalar_lea.hbm %s2, %s324
          %s326 = sshll.u32 %s319, 4
          %s327 = int_to_ptr.vmem [resolvable:$true] %s326
          %332 = dma.hbm_to_vmem [thread:$0]  %s325, 256, %s327, %s316, 64, 64, 4
        $region28: #{tpu_custom_call.1} parent=15 // pred_fallthru
          _
        // Predicated region
        $region29: #{tpu_custom_call.1} parent=15 // pred_check
          %p333 = pneg %p133
        $region30: #{tpu_custom_call.1} parent=15 // pred_check_branch
          %335 = sbr.rel (%p333) target = $region32
        $region31: #{tpu_custom_call.1} parent=15 // pred_region
          %p336 = scmp.lt.s32.totalorder %s31, 1
          %s337 = scalar_select %p336, %s31, 1
          %s338 = scalar_lea.vmem %s3, %s337
        $region32: #{tpu_custom_call.1} parent=15 // pred_fallthru
          _
        // Predicated region
        $region33: #{tpu_custom_call.1} parent=15 // pred_check
          %p339 = pneg %p159
        $region34: #{tpu_custom_call.1} parent=15 // pred_check_branch
          %341 = sbr.rel (%p339) target = $region36
        $region35: #{tpu_custom_call.1} parent=15 // pred_region
          %s342 = sand.u32 %s23, 1
          %s343 = scalar_lea.sflag [#allocation10], %s342
          %s344 = sand.u32 %s149, 1
          %s345 = smul.addr %s344, 16
          %s346 = scalar_lea.vmem [#allocation11], %s345
          %s348 = ssub.s32 256, 256
          %349 = vsyncadd %s343, %s348
          %s350 = smul.addr %s31, 4
          %s351 = smul.addr %s350, 64
          %s352 = scalar_lea.hbm %s4, %s351
          %s353 = sshll.u32 %s346, 4
          %s354 = int_to_ptr.vmem [resolvable:$true] %s353
          %359 = dma.hbm_to_vmem [thread:$0]  %s352, 256, %s354, %s343, 64, 64, 4
        $region36: #{tpu_custom_call.1} parent=15 // pred_fallthru
          _
        // Predicated region
        $region37: #{tpu_custom_call.1} parent=15 // pred_check
          %p360 = pneg %p185
        $region38: #{tpu_custom_call.1} parent=15 // pred_check_branch
          %362 = sbr.rel (%p360) target = $region40
        $region39: #{tpu_custom_call.1} parent=15 // pred_region
          %p363 = scmp.lt.s32.totalorder %s31, 1
          %s364 = scalar_select %p363, %s31, 1
          %s365 = scalar_lea.vmem %s5, %s364
        $region40: #{tpu_custom_call.1} parent=15 // pred_fallthru
          _
        // Predicated region
        $region41: #{tpu_custom_call.1} parent=15 // pred_check
          %p366 = pneg %p211
        $region42: #{tpu_custom_call.1} parent=15 // pred_check_branch
          %368 = sbr.rel (%p366) target = $region44
        $region43: #{tpu_custom_call.1} parent=15 // pred_region
          %p369 = scmp.lt.s32.totalorder %s31, 1
          %s370 = scalar_select %p369, %s31, 1
          %s371 = scalar_lea.vmem %s6, %s370
        $region44: #{tpu_custom_call.1} parent=15 // pred_fallthru
          _
        // Predicated region
        $region45: #{tpu_custom_call.1} parent=15 // pred_check
          %p372 = pneg %p237
        $region46: #{tpu_custom_call.1} parent=15 // pred_check_branch
          %374 = sbr.rel (%p372) target = $region48
        $region47: #{tpu_custom_call.1} parent=15 // pred_region
          %p375 = scmp.lt.s32.totalorder %s31, 1
          %s376 = scalar_select %p375, %s31, 1
          %s377 = scalar_lea.vmem %s7, %s376
        $region48: #{tpu_custom_call.1} parent=15 // pred_fallthru
          _
      $region16: #{tpu_custom_call.1} parent=5 // pred_fallthru
        _
      %p378 = scmp.le.s32.totalorder 1, %s23
      %p379 = scmp.lt.s32.totalorder %s23, 5
      %p380 = pnand %p378, %p379
      %p381 = pneg %p380
      // Predicated region
      $region49: #{tpu_custom_call.1} parent=5 // pred_check
        _
      $region50: #{tpu_custom_call.1} parent=5 // pred_check_branch
        %383 = sbr.rel (%p380) target = $region52
      $region51: #{tpu_custom_call.1} parent=5 // pred_region
        %s384 = ssub.s32 %s23, 1
        %s385 = sand.u32 %s48, 1
        %s386 = scalar_lea.sflag [#allocation7], %s385
        %s387 = sand.u32 %s48, 1
        %s388 = smul.addr %s387, 4
        %s389 = scalar_lea.vmem [#allocation6], %s388
        // Predicated region
        $region53: #{tpu_custom_call.1} parent=51 // pred_check
          %p390 = pneg %p61
        $region54: #{tpu_custom_call.1} parent=51 // pred_check_branch
          %392 = sbr.rel (%p390) target = $region56
        $region55: #{tpu_custom_call.1} parent=51 // pred_region
          %393 = dma.done %s386, 64
        $region56: #{tpu_custom_call.1} parent=51 // pred_fallthru
          _
        %s394 = sand.u32 %s28, 1
        %s395 = scalar_lea.sflag [#allocation10], %s394
        %s396 = sand.u32 %s100, 1
        %s397 = smul.addr %s396, 16
        %s398 = scalar_lea.vmem [#allocation9], %s397
        // Predicated region
        $region57: #{tpu_custom_call.1} parent=51 // pred_check
          %p399 = pneg %p113
        $region58: #{tpu_custom_call.1} parent=51 // pred_check_branch
          %401 = sbr.rel (%p399) target = $region60
        $region59: #{tpu_custom_call.1} parent=51 // pred_region
          %402 = dma.done %s395, 256
        $region60: #{tpu_custom_call.1} parent=51 // pred_fallthru
          _
        %s403 = sand.u32 %s28, 1
        %s404 = scalar_lea.sflag [#allocation10], %s403
        %s405 = sand.u32 %s152, 1
        %s406 = smul.addr %s405, 16
        %s407 = scalar_lea.vmem [#allocation11], %s406
        // Predicated region
        $region61: #{tpu_custom_call.1} parent=51 // pred_check
          %p408 = pneg %p165
        $region62: #{tpu_custom_call.1} parent=51 // pred_check_branch
          %410 = sbr.rel (%p408) target = $region64
        $region63: #{tpu_custom_call.1} parent=51 // pred_region
          %411 = dma.done %s404, 256
        $region64: #{tpu_custom_call.1} parent=51 // pred_fallthru
          _
        %s412 = sand.u32 %s48, 1
        %s413 = scalar_lea.sflag [#allocation7], %s412
        %s414 = sand.u32 %s48, 1
        %s415 = smul.addr %s414, 4
        %s416 = scalar_lea.vmem [#allocation6], %s415
        %p417 = pneg %p61
        %p418 = pneg %p58
        %p419 = scmp.lt.s32.totalorder %s32, 1
        %s420 = scalar_select %p419, %s32, 1
        %s421 = scalar_lea.vmem %s1, %s420
        %p422 = pneg %p87
        %p423 = pneg %p84
        %s424 = sand.u32 %s28, 1
        %s425 = scalar_lea.sflag [#allocation10], %s424
        %s426 = sand.u32 %s100, 1
        %s427 = smul.addr %s426, 16
        %s428 = scalar_lea.vmem [#allocation9], %s427
        %p429 = pneg %p113
        %p430 = pneg %p110
        %p431 = scmp.lt.s32.totalorder %s33, 1
        %s432 = scalar_select %p431, %s33, 1
        %s433 = scalar_lea.vmem %s3, %s432
        %p434 = pneg %p139
        %p435 = pneg %p136
        %s436 = sand.u32 %s28, 1
        %s437 = scalar_lea.sflag [#allocation10], %s436
        %s438 = sand.u32 %s152, 1
        %s439 = smul.addr %s438, 16
        %s440 = scalar_lea.vmem [#allocation11], %s439
        %p441 = pneg %p165
        %p442 = pneg %p162
        %p443 = scmp.lt.s32.totalorder %s33, 1
        %s444 = scalar_select %p443, %s33, 1
        %s445 = scalar_lea.vmem %s5, %s444
        %p446 = pneg %p191
        %p447 = pneg %p188
        %p448 = scmp.lt.s32.totalorder %s33, 1
        %s449 = scalar_select %p448, %s33, 1
        %s450 = scalar_lea.vmem %s6, %s449
        %p451 = pneg %p217
        %p452 = pneg %p214
        %p453 = scmp.lt.s32.totalorder %s33, 1
        %s454 = scalar_select %p453, %s33, 1
        %s455 = scalar_lea.vmem %s7, %s454
        %p456 = pneg %p243
        %p457 = pneg %p240
        %p458 = pneg %p269
        %p459 = pneg %p266
        %s460 = sand.u32 %s256, 1
        %s461 = scalar_lea.sflag [#allocation8], %s460
        %s462 = sand.u32 %s256, 1
        %s463 = smul.addr %s462, 8
        %s464 = scalar_lea.vmem [#allocation12], %s463
        %p465 = scmp.lt.s32.totalorder %s32, 1
        %s466 = scalar_select %p465, %s32, 1
        %s467 = scalar_lea.vmem %s1, %s466
        %p468 = scmp.lt.s32.totalorder %s33, 1
        %s469 = scalar_select %p468, %s33, 1
        %s470 = scalar_lea.vmem %s3, %s469
        %p471 = scmp.lt.s32.totalorder %s33, 1
        %s472 = scalar_select %p471, %s33, 1
        %s473 = scalar_lea.vmem %s5, %s472
        %p474 = scmp.lt.s32.totalorder %s33, 1
        %s475 = scalar_select %p474, %s33, 1
        %s476 = scalar_lea.vmem %s6, %s475
        %p477 = scmp.lt.s32.totalorder %s33, 1
        %s478 = scalar_select %p477, %s33, 1
        %s479 = scalar_lea.vmem %s7, %s478
        %p481 = scmp.eq.s32.totalorder %s33, 0
        // Predicated region
        $region65: #{tpu_custom_call.1} parent=51 // pred_check
          %p482 = pneg %p481
        $region66: #{tpu_custom_call.1} parent=51 // pred_check_branch
          %484 = sbr.rel (%p482) target = $region68
        $region67: #{tpu_custom_call.1} parent=51 // pred_region
          %v485 = vld [vmem:[%s389] sm:$0xf]
          %v486 = vunpack.c.l.bf16 %v485
          %vm487 = vcmask 261120
          %488 = vst.msk [vmem:[#allocation2] sm:$0xff] %vm487, %v486
        $region68: #{tpu_custom_call.1} parent=51 // pred_fallthru
          _
        %v489 = vld [vmem:[#allocation2] sm:$0xff]
        %v490 = vpack.c.bf16 %v489, %v489
        %v491 = vld [vmem:[%s467] sm:$0x1]
        %v492 = vsub.f32 1.0, %v491
        %v493 = vmul.f32 %v492, -10000.0
        %v494 = vld [vmem:[%s398] sm:$0xf]
        %v495 = vld [vmem:[%s398 + $0x4] sm:$0xf]
        %v496 = vld [vmem:[%s398 + $0x8] sm:$0xf]
        %v497 = vld [vmem:[%s398 + $0xc] sm:$0xf]
        %v498 = vld [vmem:[%s470] sm:$0x1]
        %v500 = vlaneseq
        %v501 = vshrl.u32 %v500, 7
        %v502 = vsub.s32 0, %v501
        %v503 = vrot.slane %v498, %v502
        %v509 = vunpack.c.l.b16 %v494
        %v510 = vunpack.c.l.b16 %v495
        %v511 = vunpack.c.l.b16 %v496
        %v512 = vunpack.c.l.b16 %v497
        %v513 = vpack.c.b16 %v510, %v509
        %v514 = vpack.c.b16 %v512, %v511
        %vm517 = vcmask 261120
        %v519 = vsel %vm517, %v490, 0
        %521 = vmatprep.subr.bf16.mxu0 0
        %522 = vmatpush1.bf16.msra.mxu0 %v513
        %523 = vmatprep.subr.bf16.mxu0 0
        %524 = vmatpush1.bf16.msra.mxu0 %v514
        %525 = vmatprep.subr.bf16.mxu0 0
        %526 = vmatpush1.bf16.msra.mxu0 0
        %527 = vmatprep.subr.bf16.mxu0 0
        %528 = vmatpush1.bf16.msra.mxu0 0
        %529 = vmatprep.subr.bf16.mxu0 0
        %530 = vmatpush1.bf16.msra.mxu0 0
        %531 = vmatprep.subr.bf16.mxu0 0
        %532 = vmatpush1.bf16.msra.mxu0 0
        %533 = vmatprep.subr.bf16.mxu0 0
        %534 = vmatpush1.bf16.msra.mxu0 0
        %535 = vmatprep.subr.bf16.mxu0 0
        %536 = vmatpush1.bf16.msra.mxu0 0
        %537 = vmatprep.subr.bf16.mxu0 0
        %538 = vmatpush1.bf16.msra.mxu0 0
        %539 = vmatprep.subr.bf16.mxu0 0
        %540 = vmatpush1.bf16.msra.mxu0 0
        %541 = vmatprep.subr.bf16.mxu0 0
        %542 = vmatpush1.bf16.msra.mxu0 0
        %543 = vmatprep.subr.bf16.mxu0 0
        %544 = vmatpush1.bf16.msra.mxu0 0
        %545 = vmatprep.subr.bf16.mxu0 0
        %546 = vmatpush1.bf16.msra.mxu0 0
        %547 = vmatprep.subr.bf16.mxu0 0
        %548 = vmatpush1.bf16.msra.mxu0 0
        %549 = vmatprep.subr.bf16.mxu0 0
        %550 = vmatpush1.bf16.msra.mxu0 0
        %551 = vmatprep.subr.bf16.mxu0 0
        %552 = vmatpush1.bf16.msra.mxu0 0
        %553 = vmatprep.mubr.bf16.mxu0 0
        %554 = vmatmul.mubr.bf16.gmra.mrb[0].mxu0 %v519
        %v555 = vpop.f32.mrb[0].mxu0
        %v556 = vadd.f32 %v503, %v555
        %v557 = vpop.f32.mrb[0].mxu0
        %v558 = vpop.f32.mrb[0].mxu0
        %v559 = vpop.f32.mrb[0].mxu0
        %560 = vdwg.mxu0
        %v561 = vpack.c.bf16 %v556, %v556
        %vm562 = vcmask 60416
        %563 = vst.msk [vmem:[#allocation3] sm:$0xf] %vm562, %v561
        %v565 = vunpack.c.l.b16 %v561
        %v566 = vpack.c.b16 %v565, %v565
        %567 = vrot.lane.b32.xlu0 %v566, 120
        %v568 = vpop.permute.xlu0 %567
        %s570 = scalar_lea.vmem [#allocation3], 4
        %571 = vst.msk [vmem:[%s570] sm:$0xf] %vm562, %v568
        %572 = vrot.lane.b32.xlu0 %v566, 112
        %v573 = vpop.permute.xlu0 %572
        %s575 = scalar_lea.vmem [#allocation3], 8
        %576 = vst.msk [vmem:[%s575] sm:$0xf] %vm562, %v573
        %577 = vrot.lane.b32.xlu0 %v566, 104
        %v578 = vpop.permute.xlu0 %577
        %s580 = scalar_lea.vmem [#allocation3], 12
        %581 = vst.msk [vmem:[%s580] sm:$0xf] %vm562, %v578
        %582 = vrot.lane.b32.xlu0 %v566, 96
        %v583 = vpop.permute.xlu0 %582
        %s585 = scalar_lea.vmem [#allocation3], 16
        %586 = vst.msk [vmem:[%s585] sm:$0xf] %vm562, %v583
        %587 = vrot.lane.b32.xlu0 %v566, 88
        %v588 = vpop.permute.xlu0 %587
        %s590 = scalar_lea.vmem [#allocation3], 20
        %591 = vst.msk [vmem:[%s590] sm:$0xf] %vm562, %v588
        %592 = vrot.lane.b32.xlu0 %v566, 80
        %v593 = vpop.permute.xlu0 %592
        %s595 = scalar_lea.vmem [#allocation3], 24
        %596 = vst.msk [vmem:[%s595] sm:$0xf] %vm562, %v593
        %597 = vrot.lane.b32.xlu0 %v566, 72
        %v598 = vpop.permute.xlu0 %597
        %s600 = scalar_lea.vmem [#allocation3], 28
        %601 = vst.msk [vmem:[%s600] sm:$0xf] %vm562, %v598
        %602 = vrot.lane.b32.xlu0 %v566, 64
        %v603 = vpop.permute.xlu0 %602
        %s605 = scalar_lea.vmem [#allocation3], 32
        %606 = vst.msk [vmem:[%s605] sm:$0xf] %vm562, %v603
        %607 = vrot.lane.b32.xlu0 %v566, 56
        %v608 = vpop.permute.xlu0 %607
        %s610 = scalar_lea.vmem [#allocation3], 36
        %611 = vst.msk [vmem:[%s610] sm:$0xf] %vm562, %v608
        %612 = vrot.lane.b32.xlu0 %v566, 48
        %v613 = vpop.permute.xlu0 %612
        %s615 = scalar_lea.vmem [#allocation3], 40
        %616 = vst.msk [vmem:[%s615] sm:$0xf] %vm562, %v613
        %617 = vrot.lane.b32.xlu0 %v566, 40
        %v618 = vpop.permute.xlu0 %617
        %s620 = scalar_lea.vmem [#allocation3], 44
        %621 = vst.msk [vmem:[%s620] sm:$0xf] %vm562, %v618
        loop: start=0, step=1, limit=4
        $region69: #{tpu_custom_call.1} parent=51 // loop_pre_header
          _
        $region70: #{tpu_custom_call.1} parent=51 // loop_header
          %s623 = sphi 0, %s627
          %p624 = scmp.ge.s32.totalorder %s623, 4
        $region71: #{tpu_custom_call.1} parent=51 // loop_header_branch
          %626 = sbr.rel (%p624) target = $region75
        $region72: #{tpu_custom_call.1} parent=51 // loop_body
          %s628 = smul.addr %s623, 4
          %s629 = scalar_lea.vmem [#allocation3], %s628
          %v630 = vld [vmem:[%s629] sm:$0xf]
          %s631 = sadd.s32 %s623, 4
          %s632 = smul.addr %s631, 4
          %s633 = scalar_lea.vmem [#allocation3], %s632
          %v634 = vld [vmem:[%s633] sm:$0xf]
          %s635 = sadd.s32 %s623, 8
          %s636 = smul.addr %s635, 4
          %s637 = scalar_lea.vmem [#allocation3], %s636
          %v638 = vld [vmem:[%s637] sm:$0xf]
          %v640 = vlaneseq
          %v641 = vshrl.u32 %v640, 7
          %v642 = vsub.s32 0, %v641
          %v643 = vrot.slane %v493, %v642
          %vm645 = vcmask 64512
          %v647 = vsel %vm645, %v630, 0
          %v650 = vsel %vm645, %v634, 0
          %652 = vmatprep.subr.bf16.mxu0 0
          %653 = vmatpush1.bf16.xpose.msra.mxu0 %v650
          %654 = vmatprep.subr.bf16.mxu0 0
          %655 = vmatpush1.bf16.xpose.msra.mxu0 0
          %656 = vmatprep.subr.bf16.mxu0 0
          %657 = vmatpush1.bf16.xpose.msra.mxu0 0
          %658 = vmatprep.subr.bf16.mxu0 0
          %659 = vmatpush1.bf16.xpose.msra.mxu0 0
          %660 = vmatprep.subr.bf16.mxu0 0
          %661 = vmatpush1.bf16.xpose.msra.mxu0 0
          %662 = vmatprep.subr.bf16.mxu0 0
          %663 = vmatpush1.bf16.xpose.msra.mxu0 0
          %664 = vmatprep.subr.bf16.mxu0 0
          %665 = vmatpush1.bf16.xpose.msra.mxu0 0
          %666 = vmatprep.subr.bf16.mxu0 0
          %667 = vmatpush1.bf16.xpose.msra.mxu0 0
          %668 = vmatprep.subr.bf16.mxu0 0
          %669 = vmatpush1.bf16.xpose.msra.mxu0 0
          %670 = vmatprep.subr.bf16.mxu0 0
          %671 = vmatpush1.bf16.xpose.msra.mxu0 0
          %672 = vmatprep.subr.bf16.mxu0 0
          %673 = vmatpush1.bf16.xpose.msra.mxu0 0
          %674 = vmatprep.subr.bf16.mxu0 0
          %675 = vmatpush1.bf16.xpose.msra.mxu0 0
          %676 = vmatprep.subr.bf16.mxu0 0
          %677 = vmatpush1.bf16.xpose.msra.mxu0 0
          %678 = vmatprep.subr.bf16.mxu0 0
          %679 = vmatpush1.bf16.xpose.msra.mxu0 0
          %680 = vmatprep.subr.bf16.mxu0 0
          %681 = vmatpush1.bf16.xpose.msra.mxu0 0
          %682 = vmatprep.subr.bf16.mxu0 0
          %683 = vmatpush1.bf16.xpose.msra.mxu0 0
          %684 = vmatprep.mubr.bf16.mxu0 0
          %685 = vmatmul.mubr.bf16.gmra.mrb[0].mxu0 %v647
          %v686 = vpop.f32.mrb[0].mxu0
          %v687 = vadd.f32 %v643, %v686
          %v688 = vpop.f32.mrb[0].mxu0
          %v689 = vpop.f32.mrb[0].mxu0
          %v690 = vpop.f32.mrb[0].mxu0
          %691 = vdwg.mxu0
          %v692 = vsel %vm645, %v687, -inf
          %693 = vmax.xlane.f32.xlu0 %v692
          %v694 = vpop.xlane.xlu0 %693
          %v695 = vsub.f32 %v687, %v694
          %v696 = vmul.f32 %v695, 1.442695
          %v697 = vpow.pop %v696
          %v698 = vsel %vm645, %v697, 0.0
          %699 = vadd.xlane.f32.xlu0 %v698
          %v700 = vpop.xlane.xlu0 %699
          %v701 = vrcp.pop %v700
          %v702 = vmul.f32 %v697, %v701
          %v703 = vpack.c.bf16 %v702, %v702
          %v705 = vsel %vm645, %v703, 0
          %vm707 = vcmask 1043456
          %v709 = vsel %vm707, %v638, 0
          %711 = vmatprep.subr.bf16.mxu0 0
          %712 = vmatpush1.bf16.msra.mxu0 %v709
          %713 = vmatprep.subr.bf16.mxu0 0
          %714 = vmatpush1.bf16.msra.mxu0 0
          %715 = vmatprep.subr.bf16.mxu0 0
          %716 = vmatpush1.bf16.msra.mxu0 0
          %717 = vmatprep.subr.bf16.mxu0 0
          %718 = vmatpush1.bf16.msra.mxu0 0
          %719 = vmatprep.subr.bf16.mxu0 0
          %720 = vmatpush1.bf16.msra.mxu0 0
          %721 = vmatprep.subr.bf16.mxu0 0
          %722 = vmatpush1.bf16.msra.mxu0 0
          %723 = vmatprep.subr.bf16.mxu0 0
          %724 = vmatpush1.bf16.msra.mxu0 0
          %725 = vmatprep.subr.bf16.mxu0 0
          %726 = vmatpush1.bf16.msra.mxu0 0
          %727 = vmatprep.subr.bf16.mxu0 0
          %728 = vmatpush1.bf16.msra.mxu0 0
          %729 = vmatprep.subr.bf16.mxu0 0
          %730 = vmatpush1.bf16.msra.mxu0 0
          %731 = vmatprep.subr.bf16.mxu0 0
          %732 = vmatpush1.bf16.msra.mxu0 0
          %733 = vmatprep.subr.bf16.mxu0 0
          %734 = vmatpush1.bf16.msra.mxu0 0
          %735 = vmatprep.subr.bf16.mxu0 0
          %736 = vmatpush1.bf16.msra.mxu0 0
          %737 = vmatprep.subr.bf16.mxu0 0
          %738 = vmatpush1.bf16.msra.mxu0 0
          %739 = vmatprep.subr.bf16.mxu0 0
          %740 = vmatpush1.bf16.msra.mxu0 0
          %741 = vmatprep.subr.bf16.mxu0 0
          %742 = vmatpush1.bf16.msra.mxu0 0
          %743 = vmatprep.mubr.bf16.mxu0 0
          %744 = vmatmul.mubr.bf16.gmra.mrb[0].mxu0 %v705
          %v745 = vpop.f32.mrb[0].mxu0
          %v746 = vadd.f32 0.0, %v745
          %v747 = vpop.f32.mrb[0].mxu0
          %v748 = vpop.f32.mrb[0].mxu0
          %v749 = vpop.f32.mrb[0].mxu0
          %750 = vdwg.mxu0
          %v751 = vpack.c.bf16 %v746, %v746
          %s752 = smul.addr %s623, 4
          %s753 = scalar_lea.vmem [#allocation4], %s752
          %754 = vst.msk [vmem:[%s753] sm:$0xf] %vm562, %v751
        $region73: #{tpu_custom_call.1} parent=51 // loop_footer
          %s627 = sadd.s32 1, %s623
        $region74: #{tpu_custom_call.1} parent=51 // loop_footer_branch
          %622 = sbr.rel target = $region70
        $region75: #{tpu_custom_call.1} parent=51 // loop_exit
          _
        %v755 = vld [vmem:[#allocation4] sm:$0xf]
        %756 = vst.msk [vmem:[#allocation5] sm:$0xf] %vm562, %v755
        %s757 = scalar_lea.vmem [#allocation4], 4
        %v758 = vld [vmem:[%s757] sm:$0xf]
        %760 = vrot.lane.b32.xlu0 %v758, 8
        %v761 = vpop.permute.xlu0 %760
        %vm763 = vcmask 126016
        %764 = vst.msk [vmem:[#allocation5] sm:$0xf] %vm763, %v761
        %s765 = scalar_lea.vmem [#allocation4], 8
        %v766 = vld [vmem:[%s765] sm:$0xf]
        %768 = vrot.lane.b32.xlu0 %v766, 16
        %v769 = vpop.permute.xlu0 %768
        %vm771 = vcmask 191616
        %772 = vst.msk [vmem:[#allocation5] sm:$0xf] %vm771, %v769
        %s773 = scalar_lea.vmem [#allocation4], 12
        %v774 = vld [vmem:[%s773] sm:$0xf]
        %776 = vrot.lane.b32.xlu0 %v774, 24
        %v777 = vpop.permute.xlu0 %776
        %vm779 = vcmask 257216
        %780 = vst.msk [vmem:[#allocation5] sm:$0xf] %vm779, %v777
        %v781 = vld [vmem:[#allocation5] sm:$0xf]
        %v782 = vld [vmem:[%s407] sm:$0xf]
        %v783 = vld [vmem:[%s407 + $0x4] sm:$0xf]
        %v784 = vld [vmem:[%s407 + $0x8] sm:$0xf]
        %v785 = vld [vmem:[%s407 + $0xc] sm:$0xf]
        %v786 = vld [vmem:[%s473] sm:$0x1]
        %v788 = vlaneseq
        %v789 = vshrl.u32 %v788, 7
        %v790 = vsub.s32 0, %v789
        %v791 = vrot.slane %v786, %v790
        %v797 = vunpack.c.l.b16 %v782
        %v798 = vunpack.c.l.b16 %v783
        %v799 = vunpack.c.l.b16 %v784
        %v800 = vunpack.c.l.b16 %v785
        %v801 = vpack.c.b16 %v798, %v797
        %v802 = vpack.c.b16 %v800, %v799
        %v806 = vsel %vm517, %v781, 0
        %808 = vmatprep.subr.bf16.mxu0 0
        %809 = vmatpush1.bf16.msra.mxu0 %v801
        %810 = vmatprep.subr.bf16.mxu0 0
        %811 = vmatpush1.bf16.msra.mxu0 %v802
        %812 = vmatprep.subr.bf16.mxu0 0
        %813 = vmatpush1.bf16.msra.mxu0 0
        %814 = vmatprep.subr.bf16.mxu0 0
        %815 = vmatpush1.bf16.msra.mxu0 0
        %816 = vmatprep.subr.bf16.mxu0 0
        %817 = vmatpush1.bf16.msra.mxu0 0
        %818 = vmatprep.subr.bf16.mxu0 0
        %819 = vmatpush1.bf16.msra.mxu0 0
        %820 = vmatprep.subr.bf16.mxu0 0
        %821 = vmatpush1.bf16.msra.mxu0 0
        %822 = vmatprep.subr.bf16.mxu0 0
        %823 = vmatpush1.bf16.msra.mxu0 0
        %824 = vmatprep.subr.bf16.mxu0 0
        %825 = vmatpush1.bf16.msra.mxu0 0
        %826 = vmatprep.subr.bf16.mxu0 0
        %827 = vmatpush1.bf16.msra.mxu0 0
        %828 = vmatprep.subr.bf16.mxu0 0
        %829 = vmatpush1.bf16.msra.mxu0 0
        %830 = vmatprep.subr.bf16.mxu0 0
        %831 = vmatpush1.bf16.msra.mxu0 0
        %832 = vmatprep.subr.bf16.mxu0 0
        %833 = vmatpush1.bf16.msra.mxu0 0
        %834 = vmatprep.subr.bf16.mxu0 0
        %835 = vmatpush1.bf16.msra.mxu0 0
        %836 = vmatprep.subr.bf16.mxu0 0
        %837 = vmatpush1.bf16.msra.mxu0 0
        %838 = vmatprep.subr.bf16.mxu0 0
        %839 = vmatpush1.bf16.msra.mxu0 0
        %840 = vmatprep.mubr.bf16.mxu0 0
        %841 = vmatmul.mubr.bf16.gmra.mrb[0].mxu0 %v806
        %v842 = vpop.f32.mrb[0].mxu0
        %v843 = vadd.f32 %v791, %v842
        %v844 = vpop.f32.mrb[0].mxu0
        %v845 = vpop.f32.mrb[0].mxu0
        %v846 = vpop.f32.mrb[0].mxu0
        %847 = vdwg.mxu0
        %v848 = vmul.f32 %v843, 0.5
        %v849 = vmul.f32 %v843, %v843
        %v850 = vmul.f32 %v849, %v843
        %v851 = vmul.f32 %v850, 0.044715
        %v852 = vadd.f32 %v843, %v851
        %v853 = vmul.f32 %v852, 0.7978846
        %v854 = vtanh.pop %v853
        %v855 = vadd.f32 %v854, 1.0
        %v856 = vmul.f32 %v848, %v855
        %v857 = vadd.f32 %v489, %v856
        %v858 = vsel %vm517, %v857, 0.0
        %859 = vadd.xlane.f32.xlu0 %v858
        %v860 = vpop.xlane.xlu0 %859
        %v861 = vrcp.pop 32.0
        %v862 = vmul.f32 %v860, %v861
        %v863 = vsub.f32 %v857, %v862
        %v864 = vmul.f32 %v863, %v863
        %v865 = vsel %vm517, %v864, 0.0
        %866 = vadd.xlane.f32.xlu0 %v865
        %v867 = vpop.xlane.xlu0 %866
        %v868 = vmul.f32 %v867, %v861
        %v869 = vadd.f32 %v868, 1e-10
        %v870 = vrsqrt.pop %v869
        %v871 = vmul.f32 %v863, %v870
        %v872 = vld [vmem:[%s476] sm:$0x1]
        %v874 = vlaneseq
        %v875 = vshrl.u32 %v874, 7
        %v876 = vsub.s32 0, %v875
        %v877 = vrot.slane %v872, %v876
        %v879 = vmul.f32 %v871, %v877
        %v880 = vld [vmem:[%s479] sm:$0x1]
        %v882 = vlaneseq
        %v883 = vshrl.u32 %v882, 7
        %v884 = vsub.s32 0, %v883
        %v885 = vrot.slane %v880, %v884
        %v887 = vadd.f32 %v879, %v885
        %888 = vst.msk [vmem:[#allocation2] sm:$0xff] %vm517, %v887
        %p889 = scmp.eq.s32.totalorder %s33, 1
        // Predicated region
        $region76: #{tpu_custom_call.1} parent=51 // pred_check
          %p890 = pneg %p889
        $region77: #{tpu_custom_call.1} parent=51 // pred_check_branch
          %892 = sbr.rel (%p890) target = $region79
        $region78: #{tpu_custom_call.1} parent=51 // pred_region
          %893 = vst.msk [vmem:[%s464] sm:$0xff] %vm517, %v887
        $region79: #{tpu_custom_call.1} parent=51 // pred_fallthru
          _
        %s894 = sand.u32 %s256, 1
        %s895 = scalar_lea.sflag [#allocation8], %s894
        %s896 = sand.u32 %s256, 1
        %s897 = smul.addr %s896, 8
        %s898 = scalar_lea.vmem [#allocation12], %s897
        // Predicated region
        $region80: #{tpu_custom_call.1} parent=51 // pred_check
          %p899 = pneg %p266
        $region81: #{tpu_custom_call.1} parent=51 // pred_check_branch
          %901 = sbr.rel (%p899) target = $region83
        $region82: #{tpu_custom_call.1} parent=51 // pred_region
          %s903 = ssub.s32 128, 128
          %904 = vsyncadd %s895, %s903
          %s905 = smul.addr %s32, 128
          %s906 = scalar_lea.hbm %s8, %s905
          %s908 = sshll.u32 %s898, 4
          %s909 = int_to_ptr.vmem [resolvable:$true] %s908
          %911 = dma.vmem_to_hbm [thread:$0]  %s909, 128, %s906, %s895
        $region83: #{tpu_custom_call.1} parent=51 // pred_fallthru
          _
      $region52: #{tpu_custom_call.1} parent=5 // pred_fallthru
        _
      %p912 = scmp.le.s32.totalorder 2, %s23
      // Predicated region
      $region84: #{tpu_custom_call.1} parent=5 // pred_check
        %p913 = pneg %p912
      $region85: #{tpu_custom_call.1} parent=5 // pred_check_branch
        %915 = sbr.rel (%p913) target = $region87
      $region86: #{tpu_custom_call.1} parent=5 // pred_region
        %s916 = ssub.s32 %s23, 2
        // Predicated region
        $region88: #{tpu_custom_call.1} parent=86 // pred_check
          %p917 = pneg %p272
        $region89: #{tpu_custom_call.1} parent=86 // pred_check_branch
          %919 = sbr.rel (%p917) target = $region91
        $region90: #{tpu_custom_call.1} parent=86 // pred_region
          %s920 = sand.u32 %s257, 1
          %s921 = scalar_lea.sflag [#allocation8], %s920
          %s922 = sand.u32 %s257, 1
          %s923 = smul.addr %s922, 8
          %s924 = scalar_lea.vmem [#allocation12], %s923
          %925 = dma.done %s921, 128
        $region91: #{tpu_custom_call.1} parent=86 // pred_fallthru
          _
      $region87: #{tpu_custom_call.1} parent=5 // pred_fallthru
        _
    $region6: #{tpu_custom_call.1} parent=1 // loop_footer
      %s27 = sadd.s32 1, %s23
    $region7: #{tpu_custom_call.1} parent=1 // loop_footer_branch
      %22 = sbr.rel target = $region3
    $region8: #{tpu_custom_call.1} parent=1 // loop_exit
      _
    %926 = vsyncpa [#allocation7], 1
    %s927 = scalar_lea.sflag [#allocation7], 1
    %928 = vsyncpa %s927, 1
    %929 = vsyncpa [#allocation10], 1
    %s930 = scalar_lea.sflag [#allocation10], 1
    %931 = vsyncpa %s930, 1
    %932 = vsyncpa [#allocation8], 1
    %s933 = scalar_lea.sflag [#allocation8], 1
    %934 = vsyncpa %s933, 1

</llo_original>
